<compile_context>
chip_gen: v7x
topology: tpu7x:2x2x1
jax: 0.10.0
libtpu: 0.0.40
codegen_flags: <defaults>
</compile_context>

<pallas_src>
import functools

import jax
import jax.numpy as jnp
import numpy as np
from jax import lax
from jax.experimental import pallas as pl
from jax.experimental.pallas import tpu as pltpu

VMEM_SPEC = pl.BlockSpec(memory_space=pltpu.MemorySpace.VMEM)


# ------------------------------ Fused kernel ---------------------------------
def fused_rnn_kernel(num_layers, seq_len, batch, hidden, x0_ref, *refs):
    """x0_ref: (S*B, 2E) f32 layer-0 combined input, row-block t = [emb[t]|emb[S-1-t]].
    refs = [w_ih_comb, w_hh_blk, bias_blk] * num_layers ++ [out_ref] ++
           [xbuf_a (S*B,4H), xbuf_b (S*B,4H), acc (S,2H)]  (VMEM scratch).
      w_ih_comb: layer0 (2E,2H) blockdiag; layers>0 (4H,2H) permuted to match
                 the scratch slab layout [fwd[t]|bwd[S-1-t]|fwd[S-1-t]|bwd[t]].
      w_hh_blk : (2H,2H) = blockdiag(W_hh_f.T, W_hh_b.T)
      bias_blk : (1,2H)  = [b_ih_f+b_hh_f | b_ih_b+b_hh_b]
    """
    S, B, H = seq_len, batch, hidden
    w_refs = refs[:3 * num_layers]
    out_ref = refs[3 * num_layers]
    buf_a, buf_b, acc_ref = refs[3 * num_layers + 1:]
    bufs = (buf_a, buf_b)

    x = x0_ref[...]                                   # (S*B, 2E)
    for l in range(num_layers):
        w_ih = w_refs[3 * l][...]                     # (Din_comb, 2H)
        w_hh = w_refs[3 * l + 1][...]                 # (2H, 2H)
        bias = w_refs[3 * l + 2][...]                 # (1, 2H)

        # Hoisted input->hidden projection: ONE batched MXU call per layer.
        ih_all = jnp.dot(x, w_ih, preferred_element_type=jnp.float32) + bias   # (S*B, 2H)

        last = (l == num_layers - 1)
        wbuf = None if last else bufs[l % 2]
        hc = jnp.zeros((B, 2 * H), jnp.float32)       # [h_fwd | h_bwd(internal step)]
        for t in range(S):                            # static -> fully unrolled
            hc = jnp.tanh(
                jnp.dot(hc, w_hh, preferred_element_type=jnp.float32)
                + ih_all[t * B:(t + 1) * B, :])
            # hc = [fwd[t] | bwd[S-1-t]]
            if last:
                # batch element 0 only: fwd[t] -> row t, bwd[S-1-t] -> row S-1-t
                acc_ref[t:t + 1, 0:H] = hc[0:1, 0:H]
                acc_ref[S - 1 - t:S - t, H:2 * H] = hc[0:1, H:2 * H]
            else:
                # slab row-block s ends up = [fwd[s]|bwd[S-1-s]|fwd[S-1-s]|bwd[s]]
                wbuf[t * B:(t + 1) * B, 0:2 * H] = hc
                wbuf[(S - 1 - t) * B:(S - t) * B, 2 * H:4 * H] = hc
        if not last:
            x = wbuf[...]                             # dense (S*B, 4H) next-layer input

    # LastTimeStep(True): mean over directions, batch element 0, all timesteps.
    out_ref[...] = 0.5 * (acc_ref[:, 0:H] + acc_ref[:, H:2 * H])


# --------------------------- Param preparation --------------------------------
def prepare_params(params):
    """Fold transposes / direction merges / bias sums once, outside forward."""
    H = params["rnn"][0]["w_hh_f"].shape[0]
    layers = []
    for l, lp in enumerate(params["rnn"]):
        wf = lp["w_ih_f"].T                            # (Din, H)
        wb = lp["w_ih_b"].T                            # (Din, H)
        if l == 0:
            # layer-0 input row = [emb[t] | emb[S-1-t]]  -> simple blockdiag
            zf = jnp.zeros_like(wf)
            zb = jnp.zeros_like(wb)
            w_ih = jnp.concatenate(
                [jnp.concatenate([wf, zf], axis=1),
                 jnp.concatenate([zb, wb], axis=1)], axis=0)          # (2E, 2H)
        else:
            # input row = [fwd[t] | bwd[S-1-t] | fwd[S-1-t] | bwd[t]]
            z = jnp.zeros((H, H), jnp.float32)
            w_ih = jnp.concatenate([
                jnp.concatenate([wf[0:H, :], z], axis=1),             # fwd[t]
                jnp.concatenate([z, wb[H:2 * H, :]], axis=1),         # bwd[S-1-t]
                jnp.concatenate([z, wb[0:H, :]], axis=1),             # fwd[S-1-t]
                jnp.concatenate([wf[H:2 * H, :], z], axis=1),         # bwd[t]
            ], axis=0)                                                 # (4H, 2H)
        z = jnp.zeros((H, H), jnp.float32)
        w_hh = jnp.concatenate(
            [jnp.concatenate([lp["w_hh_f"].T, z], axis=1),
             jnp.concatenate([z, lp["w_hh_b"].T], axis=1)], axis=0)   # (2H, 2H)
        bias = jnp.concatenate(
            [lp["b_ih_f"] + lp["b_hh_f"],
             lp["b_ih_b"] + lp["b_hh_b"]]).reshape(1, -1)              # (1, 2H)
        layers.append((w_ih, w_hh, bias))
    return params["embedding"], tuple(layers)


# ------------------------------ Forward wrapper -------------------------------
@functools.partial(jax.jit, static_argnames=("hidden",))
def simple_rnn_base_forward(tokens, table, layers, *, hidden):
    b, s = tokens.shape
    # Embedding gather (clamped ids) + dense layer-0 slab built outside the kernel.
    tok = jnp.clip(tokens.astype(jnp.int32), 0, table.shape[0] - 1)
    emb = jnp.transpose(table[tok], (1, 0, 2)).astype(jnp.float32)     # (S, B, E)
    x0 = jnp.concatenate([emb, emb[::-1]], axis=-1).reshape(s * b, -1)  # (S*B, 2E)

    flat = [t for layer in layers for t in layer]
    kernel = functools.partial(fused_rnn_kernel, len(layers), s, b, hidden)
    return pl.pallas_call(
        kernel,
        out_shape=jax.ShapeDtypeStruct((s, hidden), jnp.float32),
        in_specs=[VMEM_SPEC] * (1 + len(flat)),
        out_specs=VMEM_SPEC,
        scratch_shapes=[pltpu.VMEM((s * b, 4 * hidden), jnp.float32),
                        pltpu.VMEM((s * b, 4 * hidden), jnp.float32),
                        pltpu.VMEM((s, 2 * hidden), jnp.float32)],
    )(x0, *flat)


# --------------------------- Pure-JAX reference -------------------------------
def reference_forward(tokens, params):
    hi = lax.Precision.HIGHEST
    emb = params["embedding"][tokens]                    # (B, S, E)
    x = jnp.transpose(emb, (1, 0, 2))                    # (S, B, E)

    def run_dir(xs, w_ih, w_hh, b_ih, b_hh):
        h0 = jnp.zeros((xs.shape[1], w_hh.shape[0]), jnp.float32)

        def step(h, x_t):
            h = jnp.tanh(
                jnp.dot(x_t, w_ih.T, precision=hi)
                + jnp.dot(h, w_hh.T, precision=hi)
                + b_ih + b_hh)
            return h, h

        _, ys = lax.scan(step, h0, xs)
        return ys

    y_f = y_b = None
    for lp in params["rnn"]:
        y_f = run_dir(x, lp["w_ih_f"], lp["w_hh_f"], lp["b_ih_f"], lp["b_hh_f"])
        y_b = jnp.flip(
            run_dir(jnp.flip(x, 0), lp["w_ih_b"], lp["w_hh_b"], lp["b_ih_b"], lp["b_hh_b"]),
            0)
        x = jnp.concatenate([y_f, y_b], -1)
    return 0.5 * (y_f[:, 0, :] + y_b[:, 0, :])


# ------------------------------ Param init ------------------------------------
def init_params(key, vocab_size, embed_size, hidden, num_layers):
    keys = jax.random.split(key, 1 + num_layers)
    params = {"embedding": jax.random.normal(keys[0], (vocab_size, embed_size), jnp.float32)}
    k = 1.0 / np.sqrt(hidden)
    layers = []
    for l in range(num_layers):
        din = embed_size if l == 0 else 2 * hidden
        sub = jax.random.split(keys[1 + l], 8)
        u = lambda kk, shape: jax.random.uniform(kk, shape, jnp.float32, -k, k)
        layers.append(dict(
            w_ih_f=u(sub[0], (hidden, din)), w_hh_f=u(sub[1], (hidden, hidden)),
            b_ih_f=u(sub[2], (hidden,)),     b_hh_f=u(sub[3], (hidden,)),
            w_ih_b=u(sub[4], (hidden, din)), w_hh_b=u(sub[5], (hidden, hidden)),
            b_ih_b=u(sub[6], (hidden,)),     b_hh_b=u(sub[7], (hidden,)),
        ))
    params["rnn"] = layers
    return params


if __name__ == "__main__":
    VOCAB, EMBED, HIDDEN, LAYERS = 50, 32, 32, 3
    B, S = 2, 8

    key = jax.random.PRNGKey(0)
    pkey, tkey = jax.random.split(key)
    params = init_params(pkey, VOCAB, EMBED, HIDDEN, LAYERS)
    tokens = jax.random.randint(tkey, (B, S), 0, VOCAB, dtype=jnp.int32)

    table, layers = prepare_params(params)   # weight prep done once, outside forward
    out = jax.block_until_ready(
        simple_rnn_base_forward(tokens, table, layers, hidden=HIDDEN))
    ref = jax.block_until_ready(reference_forward(tokens, params))

    assert out.shape == (S, HIDDEN), out.shape
    np.testing.assert_allclose(np.asarray(out), np.asarray(ref), rtol=2e-2, atol=2e-2)
    print("KERNEL_OK")
</pallas_src>

<mosaic_0001>
module attributes {stable_mosaic.version = 11 : i64} {
  func.func @fused_rnn_kernel(%arg0: memref<16x64xf32, #tpu.memory_space<vmem>>, %arg1: memref<64x64xf32, #tpu.memory_space<vmem>>, %arg2: memref<64x64xf32, #tpu.memory_space<vmem>>, %arg3: memref<1x64xf32, #tpu.memory_space<vmem>>, %arg4: memref<128x64xf32, #tpu.memory_space<vmem>>, %arg5: memref<64x64xf32, #tpu.memory_space<vmem>>, %arg6: memref<1x64xf32, #tpu.memory_space<vmem>>, %arg7: memref<128x64xf32, #tpu.memory_space<vmem>>, %arg8: memref<64x64xf32, #tpu.memory_space<vmem>>, %arg9: memref<1x64xf32, #tpu.memory_space<vmem>>, %arg10: memref<8x32xf32, #tpu.memory_space<vmem>>, %arg11: memref<16x128xf32, #tpu.memory_space<vmem>>, %arg12: memref<16x128xf32, #tpu.memory_space<vmem>>, %arg13: memref<8x64xf32, #tpu.memory_space<vmem>>) attributes {dimension_semantics = [], scalar_prefetch = 0 : i64, scratch_operands = 3 : i64, tpu.core_type = #tpu.core_type<tc>} {
    %c0 = arith.constant 0 : index
    %c0_0 = arith.constant 0 : index
    %0 = vector.load %arg0[%c0, %c0_0] : memref<16x64xf32, #tpu.memory_space<vmem>>, vector<16x64xf32>
    %c0_1 = arith.constant 0 : index
    %c0_2 = arith.constant 0 : index
    %1 = vector.load %arg1[%c0_1, %c0_2] : memref<64x64xf32, #tpu.memory_space<vmem>>, vector<64x64xf32>
    %c0_3 = arith.constant 0 : index
    %c0_4 = arith.constant 0 : index
    %2 = vector.load %arg2[%c0_3, %c0_4] : memref<64x64xf32, #tpu.memory_space<vmem>>, vector<64x64xf32>
    %c0_5 = arith.constant 0 : index
    %c0_6 = arith.constant 0 : index
    %3 = vector.load %arg3[%c0_5, %c0_6] : memref<1x64xf32, #tpu.memory_space<vmem>>, vector<1x64xf32>
    %cst = arith.constant dense<0.000000e+00> : vector<16x64xf32>
    %4 = tpu.matmul %0, %1, %cst {dimension_numbers = #tpu.dot_dimension_numbers<[1], [0], [0], [1], [0, 0, 1, 1], [], []>} : vector<16x64xf32>, vector<64x64xf32>, vector<16x64xf32> -> vector<16x64xf32>
    %5 = vector.broadcast %3 : vector<1x64xf32> to vector<16x64xf32>
    %6 = arith.addf %4, %5 : vector<16x64xf32>
    %cst_7 = arith.constant 0.000000e+00 : f32
    %7 = vector.broadcast %cst_7 : f32 to vector<2x64xf32>
    %cst_8 = arith.constant dense<0.000000e+00> : vector<2x64xf32>
    %8 = tpu.matmul %7, %2, %cst_8 {dimension_numbers = #tpu.dot_dimension_numbers<[1], [0], [0], [1], [0, 0, 1, 1], [], []>} : vector<2x64xf32>, vector<64x64xf32>, vector<2x64xf32> -> vector<2x64xf32>
    %9 = vector.extract_strided_slice %6 {offsets = [0, 0], sizes = [2, 64], strides = [1, 1]} : vector<16x64xf32> to vector<2x64xf32>
    %10 = arith.addf %8, %9 : vector<2x64xf32>
    %11 = math.tanh %10 : vector<2x64xf32>
    %c0_9 = arith.constant 0 : index
    %c0_10 = arith.constant 0 : index
    %12 = vector.load %arg11[%c0_9, %c0_10] : memref<16x128xf32, #tpu.memory_space<vmem>>, vector<2x64xf32>
    tpu.vector_store %arg11[%c0_9, %c0_10], %11 {strides = array<i32>} : memref<16x128xf32, #tpu.memory_space<vmem>>, vector<2x64xf32>,
    %c14 = arith.constant 14 : index
    %c64 = arith.constant 64 : index
    %13 = vector.load %arg11[%c14, %c64] : memref<16x128xf32, #tpu.memory_space<vmem>>, vector<2x64xf32>
    tpu.vector_store %arg11[%c14, %c64], %11 {strides = array<i32>} : memref<16x128xf32, #tpu.memory_space<vmem>>, vector<2x64xf32>,
    %cst_11 = arith.constant dense<0.000000e+00> : vector<2x64xf32>
    %14 = tpu.matmul %11, %2, %cst_11 {dimension_numbers = #tpu.dot_dimension_numbers<[1], [0], [0], [1], [0, 0, 1, 1], [], []>} : vector<2x64xf32>, vector<64x64xf32>, vector<2x64xf32> -> vector<2x64xf32>
    %15 = vector.extract_strided_slice %6 {offsets = [2, 0], sizes = [2, 64], strides = [1, 1]} : vector<16x64xf32> to vector<2x64xf32>
    %16 = arith.addf %14, %15 : vector<2x64xf32>
    %17 = math.tanh %16 : vector<2x64xf32>
    %c2 = arith.constant 2 : index
    %c0_12 = arith.constant 0 : index
    %18 = vector.load %arg11[%c2, %c0_12] : memref<16x128xf32, #tpu.memory_space<vmem>>, vector<2x64xf32>
    tpu.vector_store %arg11[%c2, %c0_12], %17 {strides = array<i32>} : memref<16x128xf32, #tpu.memory_space<vmem>>, vector<2x64xf32>,
    %c12 = arith.constant 12 : index
    %c64_13 = arith.constant 64 : index
    %19 = vector.load %arg11[%c12, %c64_13] : memref<16x128xf32, #tpu.memory_space<vmem>>, vector<2x64xf32>
    tpu.vector_store %arg11[%c12, %c64_13], %17 {strides = array<i32>} : memref<16x128xf32, #tpu.memory_space<vmem>>, vector<2x64xf32>,
    %cst_14 = arith.constant dense<0.000000e+00> : vector<2x64xf32>
    %20 = tpu.matmul %17, %2, %cst_14 {dimension_numbers = #tpu.dot_dimension_numbers<[1], [0], [0], [1], [0, 0, 1, 1], [], []>} : vector<2x64xf32>, vector<64x64xf32>, vector<2x64xf32> -> vector<2x64xf32>
    %21 = vector.extract_strided_slice %6 {offsets = [4, 0], sizes = [2, 64], strides = [1, 1]} : vector<16x64xf32> to vector<2x64xf32>
    %22 = arith.addf %20, %21 : vector<2x64xf32>
    %23 = math.tanh %22 : vector<2x64xf32>
    %c4 = arith.constant 4 : index
    %c0_15 = arith.constant 0 : index
    %24 = vector.load %arg11[%c4, %c0_15] : memref<16x128xf32, #tpu.memory_space<vmem>>, vector<2x64xf32>
    tpu.vector_store %arg11[%c4, %c0_15], %23 {strides = array<i32>} : memref<16x128xf32, #tpu.memory_space<vmem>>, vector<2x64xf32>,
    %c10 = arith.constant 10 : index
    %c64_16 = arith.constant 64 : index
    %25 = vector.load %arg11[%c10, %c64_16] : memref<16x128xf32, #tpu.memory_space<vmem>>, vector<2x64xf32>
    tpu.vector_store %arg11[%c10, %c64_16], %23 {strides = array<i32>} : memref<16x128xf32, #tpu.memory_space<vmem>>, vector<2x64xf32>,
    %cst_17 = arith.constant dense<0.000000e+00> : vector<2x64xf32>
    %26 = tpu.matmul %23, %2, %cst_17 {dimension_numbers = #tpu.dot_dimension_numbers<[1], [0], [0], [1], [0, 0, 1, 1], [], []>} : vector<2x64xf32>, vector<64x64xf32>, vector<2x64xf32> -> vector<2x64xf32>
    %27 = vector.extract_strided_slice %6 {offsets = [6, 0], sizes = [2, 64], strides = [1, 1]} : vector<16x64xf32> to vector<2x64xf32>
    %28 = arith.addf %26, %27 : vector<2x64xf32>
    %29 = math.tanh %28 : vector<2x64xf32>
    %c6 = arith.constant 6 : index
    %c0_18 = arith.constant 0 : index
    %30 = vector.load %arg11[%c6, %c0_18] : memref<16x128xf32, #tpu.memory_space<vmem>>, vector<2x64xf32>
    tpu.vector_store %arg11[%c6, %c0_18], %29 {strides = array<i32>} : memref<16x128xf32, #tpu.memory_space<vmem>>, vector<2x64xf32>,
    %c8 = arith.constant 8 : index
    %c64_19 = arith.constant 64 : index
    %31 = vector.load %arg11[%c8, %c64_19] : memref<16x128xf32, #tpu.memory_space<vmem>>, vector<2x64xf32>
    tpu.vector_store %arg11[%c8, %c64_19], %29 {strides = array<i32>} : memref<16x128xf32, #tpu.memory_space<vmem>>, vector<2x64xf32>,
    %cst_20 = arith.constant dense<0.000000e+00> : vector<2x64xf32>
    %32 = tpu.matmul %29, %2, %cst_20 {dimension_numbers = #tpu.dot_dimension_numbers<[1], [0], [0], [1], [0, 0, 1, 1], [], []>} : vector<2x64xf32>, vector<64x64xf32>, vector<2x64xf32> -> vector<2x64xf32>
    %33 = vector.extract_strided_slice %6 {offsets = [8, 0], sizes = [2, 64], strides = [1, 1]} : vector<16x64xf32> to vector<2x64xf32>
    %34 = arith.addf %32, %33 : vector<2x64xf32>
    %35 = math.tanh %34 : vector<2x64xf32>
    %c8_21 = arith.constant 8 : index
    %c0_22 = arith.constant 0 : index
    %36 = vector.load %arg11[%c8_21, %c0_22] : memref<16x128xf32, #tpu.memory_space<vmem>>, vector<2x64xf32>
    tpu.vector_store %arg11[%c8_21, %c0_22], %35 {strides = array<i32>} : memref<16x128xf32, #tpu.memory_space<vmem>>, vector<2x64xf32>,
    %c6_23 = arith.constant 6 : index
    %c64_24 = arith.constant 64 : index
    %37 = vector.load %arg11[%c6_23, %c64_24] : memref<16x128xf32, #tpu.memory_space<vmem>>, vector<2x64xf32>
    tpu.vector_store %arg11[%c6_23, %c64_24], %35 {strides = array<i32>} : memref<16x128xf32, #tpu.memory_space<vmem>>, vector<2x64xf32>,
    %cst_25 = arith.constant dense<0.000000e+00> : vector<2x64xf32>
    %38 = tpu.matmul %35, %2, %cst_25 {dimension_numbers = #tpu.dot_dimension_numbers<[1], [0], [0], [1], [0, 0, 1, 1], [], []>} : vector<2x64xf32>, vector<64x64xf32>, vector<2x64xf32> -> vector<2x64xf32>
    %39 = vector.extract_strided_slice %6 {offsets = [10, 0], sizes = [2, 64], strides = [1, 1]} : vector<16x64xf32> to vector<2x64xf32>
    %40 = arith.addf %38, %39 : vector<2x64xf32>
    %41 = math.tanh %40 : vector<2x64xf32>
    %c10_26 = arith.constant 10 : index
    %c0_27 = arith.constant 0 : index
    %42 = vector.load %arg11[%c10_26, %c0_27] : memref<16x128xf32, #tpu.memory_space<vmem>>, vector<2x64xf32>
    tpu.vector_store %arg11[%c10_26, %c0_27], %41 {strides = array<i32>} : memref<16x128xf32, #tpu.memory_space<vmem>>, vector<2x64xf32>,
    %c4_28 = arith.constant 4 : index
    %c64_29 = arith.constant 64 : index
    %43 = vector.load %arg11[%c4_28, %c64_29] : memref<16x128xf32, #tpu.memory_space<vmem>>, vector<2x64xf32>
    tpu.vector_store %arg11[%c4_28, %c64_29], %41 {strides = array<i32>} : memref<16x128xf32, #tpu.memory_space<vmem>>, vector<2x64xf32>,
    %cst_30 = arith.constant dense<0.000000e+00> : vector<2x64xf32>
    %44 = tpu.matmul %41, %2, %cst_30 {dimension_numbers = #tpu.dot_dimension_numbers<[1], [0], [0], [1], [0, 0, 1, 1], [], []>} : vector<2x64xf32>, vector<64x64xf32>, vector<2x64xf32> -> vector<2x64xf32>
    %45 = vector.extract_strided_slice %6 {offsets = [12, 0], sizes = [2, 64], strides = [1, 1]} : vector<16x64xf32> to vector<2x64xf32>
    %46 = arith.addf %44, %45 : vector<2x64xf32>
    %47 = math.tanh %46 : vector<2x64xf32>
    %c12_31 = arith.constant 12 : index
    %c0_32 = arith.constant 0 : index
    %48 = vector.load %arg11[%c12_31, %c0_32] : memref<16x128xf32, #tpu.memory_space<vmem>>, vector<2x64xf32>
    tpu.vector_store %arg11[%c12_31, %c0_32], %47 {strides = array<i32>} : memref<16x128xf32, #tpu.memory_space<vmem>>, vector<2x64xf32>,
    %c2_33 = arith.constant 2 : index
    %c64_34 = arith.constant 64 : index
    %49 = vector.load %arg11[%c2_33, %c64_34] : memref<16x128xf32, #tpu.memory_space<vmem>>, vector<2x64xf32>
    tpu.vector_store %arg11[%c2_33, %c64_34], %47 {strides = array<i32>} : memref<16x128xf32, #tpu.memory_space<vmem>>, vector<2x64xf32>,
    %cst_35 = arith.constant dense<0.000000e+00> : vector<2x64xf32>
    %50 = tpu.matmul %47, %2, %cst_35 {dimension_numbers = #tpu.dot_dimension_numbers<[1], [0], [0], [1], [0, 0, 1, 1], [], []>} : vector<2x64xf32>, vector<64x64xf32>, vector<2x64xf32> -> vector<2x64xf32>
    %51 = vector.extract_strided_slice %6 {offsets = [14, 0], sizes = [2, 64], strides = [1, 1]} : vector<16x64xf32> to vector<2x64xf32>
    %52 = arith.addf %50, %51 : vector<2x64xf32>
    %53 = math.tanh %52 : vector<2x64xf32>
    %c14_36 = arith.constant 14 : index
    %c0_37 = arith.constant 0 : index
    %54 = vector.load %arg11[%c14_36, %c0_37] : memref<16x128xf32, #tpu.memory_space<vmem>>, vector<2x64xf32>
    tpu.vector_store %arg11[%c14_36, %c0_37], %53 {strides = array<i32>} : memref<16x128xf32, #tpu.memory_space<vmem>>, vector<2x64xf32>,
    %c0_38 = arith.constant 0 : index
    %c64_39 = arith.constant 64 : index
    %55 = vector.load %arg11[%c0_38, %c64_39] : memref<16x128xf32, #tpu.memory_space<vmem>>, vector<2x64xf32>
    tpu.vector_store %arg11[%c0_38, %c64_39], %53 {strides = array<i32>} : memref<16x128xf32, #tpu.memory_space<vmem>>, vector<2x64xf32>,
    %c0_40 = arith.constant 0 : index
    %c0_41 = arith.constant 0 : index
    %56 = vector.load %arg11[%c0_40, %c0_41] : memref<16x128xf32, #tpu.memory_space<vmem>>, vector<16x128xf32>
    %c0_42 = arith.constant 0 : index
    %c0_43 = arith.constant 0 : index
    %57 = vector.load %arg4[%c0_42, %c0_43] : memref<128x64xf32, #tpu.memory_space<vmem>>, vector<128x64xf32>
    %c0_44 = arith.constant 0 : index
    %c0_45 = arith.constant 0 : index
    %58 = vector.load %arg5[%c0_44, %c0_45] : memref<64x64xf32, #tpu.memory_space<vmem>>, vector<64x64xf32>
    %c0_46 = arith.constant 0 : index
    %c0_47 = arith.constant 0 : index
    %59 = vector.load %arg6[%c0_46, %c0_47] : memref<1x64xf32, #tpu.memory_space<vmem>>, vector<1x64xf32>
    %cst_48 = arith.constant dense<0.000000e+00> : vector<16x64xf32>
    %60 = tpu.matmul %56, %57, %cst_48 {dimension_numbers = #tpu.dot_dimension_numbers<[1], [0], [0], [1], [0, 0, 1, 1], [], []>} : vector<16x128xf32>, vector<128x64xf32>, vector<16x64xf32> -> vector<16x64xf32>
    %61 = vector.broadcast %59 : vector<1x64xf32> to vector<16x64xf32>
    %62 = arith.addf %60, %61 : vector<16x64xf32>
    %cst_49 = arith.constant 0.000000e+00 : f32
    %63 = vector.broadcast %cst_49 : f32 to vector<2x64xf32>
    %cst_50 = arith.constant dense<0.000000e+00> : vector<2x64xf32>
    %64 = tpu.matmul %63, %58, %cst_50 {dimension_numbers = #tpu.dot_dimension_numbers<[1], [0], [0], [1], [0, 0, 1, 1], [], []>} : vector<2x64xf32>, vector<64x64xf32>, vector<2x64xf32> -> vector<2x64xf32>
    %65 = vector.extract_strided_slice %62 {offsets = [0, 0], sizes = [2, 64], strides = [1, 1]} : vector<16x64xf32> to vector<2x64xf32>
    %66 = arith.addf %64, %65 : vector<2x64xf32>
    %67 = math.tanh %66 : vector<2x64xf32>
    %c0_51 = arith.constant 0 : index
    %c0_52 = arith.constant 0 : index
    %68 = vector.load %arg12[%c0_51, %c0_52] : memref<16x128xf32, #tpu.memory_space<vmem>>, vector<2x64xf32>
    tpu.vector_store %arg12[%c0_51, %c0_52], %67 {strides = array<i32>} : memref<16x128xf32, #tpu.memory_space<vmem>>, vector<2x64xf32>,
    %c14_53 = arith.constant 14 : index
    %c64_54 = arith.constant 64 : index
    %69 = vector.load %arg12[%c14_53, %c64_54] : memref<16x128xf32, #tpu.memory_space<vmem>>, vector<2x64xf32>
    tpu.vector_store %arg12[%c14_53, %c64_54], %67 {strides = array<i32>} : memref<16x128xf32, #tpu.memory_space<vmem>>, vector<2x64xf32>,
    %cst_55 = arith.constant dense<0.000000e+00> : vector<2x64xf32>
    %70 = tpu.matmul %67, %58, %cst_55 {dimension_numbers = #tpu.dot_dimension_numbers<[1], [0], [0], [1], [0, 0, 1, 1], [], []>} : vector<2x64xf32>, vector<64x64xf32>, vector<2x64xf32> -> vector<2x64xf32>
    %71 = vector.extract_strided_slice %62 {offsets = [2, 0], sizes = [2, 64], strides = [1, 1]} : vector<16x64xf32> to vector<2x64xf32>
    %72 = arith.addf %70, %71 : vector<2x64xf32>
    %73 = math.tanh %72 : vector<2x64xf32>
    %c2_56 = arith.constant 2 : index
    %c0_57 = arith.constant 0 : index
    %74 = vector.load %arg12[%c2_56, %c0_57] : memref<16x128xf32, #tpu.memory_space<vmem>>, vector<2x64xf32>
    tpu.vector_store %arg12[%c2_56, %c0_57], %73 {strides = array<i32>} : memref<16x128xf32, #tpu.memory_space<vmem>>, vector<2x64xf32>,
    %c12_58 = arith.constant 12 : index
    %c64_59 = arith.constant 64 : index
    %75 = vector.load %arg12[%c12_58, %c64_59] : memref<16x128xf32, #tpu.memory_space<vmem>>, vector<2x64xf32>
    tpu.vector_store %arg12[%c12_58, %c64_59], %73 {strides = array<i32>} : memref<16x128xf32, #tpu.memory_space<vmem>>, vector<2x64xf32>,
    %cst_60 = arith.constant dense<0.000000e+00> : vector<2x64xf32>
    %76 = tpu.matmul %73, %58, %cst_60 {dimension_numbers = #tpu.dot_dimension_numbers<[1], [0], [0], [1], [0, 0, 1, 1], [], []>} : vector<2x64xf32>, vector<64x64xf32>, vector<2x64xf32> -> vector<2x64xf32>
    %77 = vector.extract_strided_slice %62 {offsets = [4, 0], sizes = [2, 64], strides = [1, 1]} : vector<16x64xf32> to vector<2x64xf32>
    %78 = arith.addf %76, %77 : vector<2x64xf32>
    %79 = math.tanh %78 : vector<2x64xf32>
    %c4_61 = arith.constant 4 : index
    %c0_62 = arith.constant 0 : index
    %80 = vector.load %arg12[%c4_61, %c0_62] : memref<16x128xf32, #tpu.memory_space<vmem>>, vector<2x64xf32>
    tpu.vector_store %arg12[%c4_61, %c0_62], %79 {strides = array<i32>} : memref<16x128xf32, #tpu.memory_space<vmem>>, vector<2x64xf32>,
    %c10_63 = arith.constant 10 : index
    %c64_64 = arith.constant 64 : index
    %81 = vector.load %arg12[%c10_63, %c64_64] : memref<16x128xf32, #tpu.memory_space<vmem>>, vector<2x64xf32>
    tpu.vector_store %arg12[%c10_63, %c64_64], %79 {strides = array<i32>} : memref<16x128xf32, #tpu.memory_space<vmem>>, vector<2x64xf32>,
    %cst_65 = arith.constant dense<0.000000e+00> : vector<2x64xf32>
    %82 = tpu.matmul %79, %58, %cst_65 {dimension_numbers = #tpu.dot_dimension_numbers<[1], [0], [0], [1], [0, 0, 1, 1], [], []>} : vector<2x64xf32>, vector<64x64xf32>, vector<2x64xf32> -> vector<2x64xf32>
    %83 = vector.extract_strided_slice %62 {offsets = [6, 0], sizes = [2, 64], strides = [1, 1]} : vector<16x64xf32> to vector<2x64xf32>
    %84 = arith.addf %82, %83 : vector<2x64xf32>
    %85 = math.tanh %84 : vector<2x64xf32>
    %c6_66 = arith.constant 6 : index
    %c0_67 = arith.constant 0 : index
    %86 = vector.load %arg12[%c6_66, %c0_67] : memref<16x128xf32, #tpu.memory_space<vmem>>, vector<2x64xf32>
    tpu.vector_store %arg12[%c6_66, %c0_67], %85 {strides = array<i32>} : memref<16x128xf32, #tpu.memory_space<vmem>>, vector<2x64xf32>,
    %c8_68 = arith.constant 8 : index
    %c64_69 = arith.constant 64 : index
    %87 = vector.load %arg12[%c8_68, %c64_69] : memref<16x128xf32, #tpu.memory_space<vmem>>, vector<2x64xf32>
    tpu.vector_store %arg12[%c8_68, %c64_69], %85 {strides = array<i32>} : memref<16x128xf32, #tpu.memory_space<vmem>>, vector<2x64xf32>,
    %cst_70 = arith.constant dense<0.000000e+00> : vector<2x64xf32>
    %88 = tpu.matmul %85, %58, %cst_70 {dimension_numbers = #tpu.dot_dimension_numbers<[1], [0], [0], [1], [0, 0, 1, 1], [], []>} : vector<2x64xf32>, vector<64x64xf32>, vector<2x64xf32> -> vector<2x64xf32>
    %89 = vector.extract_strided_slice %62 {offsets = [8, 0], sizes = [2, 64], strides = [1, 1]} : vector<16x64xf32> to vector<2x64xf32>
    %90 = arith.addf %88, %89 : vector<2x64xf32>
    %91 = math.tanh %90 : vector<2x64xf32>
    %c8_71 = arith.constant 8 : index
    %c0_72 = arith.constant 0 : index
    %92 = vector.load %arg12[%c8_71, %c0_72] : memref<16x128xf32, #tpu.memory_space<vmem>>, vector<2x64xf32>
    tpu.vector_store %arg12[%c8_71, %c0_72], %91 {strides = array<i32>} : memref<16x128xf32, #tpu.memory_space<vmem>>, vector<2x64xf32>,
    %c6_73 = arith.constant 6 : index
    %c64_74 = arith.constant 64 : index
    %93 = vector.load %arg12[%c6_73, %c64_74] : memref<16x128xf32, #tpu.memory_space<vmem>>, vector<2x64xf32>
    tpu.vector_store %arg12[%c6_73, %c64_74], %91 {strides = array<i32>} : memref<16x128xf32, #tpu.memory_space<vmem>>, vector<2x64xf32>,
    %cst_75 = arith.constant dense<0.000000e+00> : vector<2x64xf32>
    %94 = tpu.matmul %91, %58, %cst_75 {dimension_numbers = #tpu.dot_dimension_numbers<[1], [0], [0], [1], [0, 0, 1, 1], [], []>} : vector<2x64xf32>, vector<64x64xf32>, vector<2x64xf32> -> vector<2x64xf32>
    %95 = vector.extract_strided_slice %62 {offsets = [10, 0], sizes = [2, 64], strides = [1, 1]} : vector<16x64xf32> to vector<2x64xf32>
    %96 = arith.addf %94, %95 : vector<2x64xf32>
    %97 = math.tanh %96 : vector<2x64xf32>
    %c10_76 = arith.constant 10 : index
    %c0_77 = arith.constant 0 : index
    %98 = vector.load %arg12[%c10_76, %c0_77] : memref<16x128xf32, #tpu.memory_space<vmem>>, vector<2x64xf32>
    tpu.vector_store %arg12[%c10_76, %c0_77], %97 {strides = array<i32>} : memref<16x128xf32, #tpu.memory_space<vmem>>, vector<2x64xf32>,
    %c4_78 = arith.constant 4 : index
    %c64_79 = arith.constant 64 : index
    %99 = vector.load %arg12[%c4_78, %c64_79] : memref<16x128xf32, #tpu.memory_space<vmem>>, vector<2x64xf32>
    tpu.vector_store %arg12[%c4_78, %c64_79], %97 {strides = array<i32>} : memref<16x128xf32, #tpu.memory_space<vmem>>, vector<2x64xf32>,
    %cst_80 = arith.constant dense<0.000000e+00> : vector<2x64xf32>
    %100 = tpu.matmul %97, %58, %cst_80 {dimension_numbers = #tpu.dot_dimension_numbers<[1], [0], [0], [1], [0, 0, 1, 1], [], []>} : vector<2x64xf32>, vector<64x64xf32>, vector<2x64xf32> -> vector<2x64xf32>
    %101 = vector.extract_strided_slice %62 {offsets = [12, 0], sizes = [2, 64], strides = [1, 1]} : vector<16x64xf32> to vector<2x64xf32>
    %102 = arith.addf %100, %101 : vector<2x64xf32>
    %103 = math.tanh %102 : vector<2x64xf32>
    %c12_81 = arith.constant 12 : index
    %c0_82 = arith.constant 0 : index
    %104 = vector.load %arg12[%c12_81, %c0_82] : memref<16x128xf32, #tpu.memory_space<vmem>>, vector<2x64xf32>
    tpu.vector_store %arg12[%c12_81, %c0_82], %103 {strides = array<i32>} : memref<16x128xf32, #tpu.memory_space<vmem>>, vector<2x64xf32>,
    %c2_83 = arith.constant 2 : index
    %c64_84 = arith.constant 64 : index
    %105 = vector.load %arg12[%c2_83, %c64_84] : memref<16x128xf32, #tpu.memory_space<vmem>>, vector<2x64xf32>
    tpu.vector_store %arg12[%c2_83, %c64_84], %103 {strides = array<i32>} : memref<16x128xf32, #tpu.memory_space<vmem>>, vector<2x64xf32>,
    %cst_85 = arith.constant dense<0.000000e+00> : vector<2x64xf32>
    %106 = tpu.matmul %103, %58, %cst_85 {dimension_numbers = #tpu.dot_dimension_numbers<[1], [0], [0], [1], [0, 0, 1, 1], [], []>} : vector<2x64xf32>, vector<64x64xf32>, vector<2x64xf32> -> vector<2x64xf32>
    %107 = vector.extract_strided_slice %62 {offsets = [14, 0], sizes = [2, 64], strides = [1, 1]} : vector<16x64xf32> to vector<2x64xf32>
    %108 = arith.addf %106, %107 : vector<2x64xf32>
    %109 = math.tanh %108 : vector<2x64xf32>
    %c14_86 = arith.constant 14 : index
    %c0_87 = arith.constant 0 : index
    %110 = vector.load %arg12[%c14_86, %c0_87] : memref<16x128xf32, #tpu.memory_space<vmem>>, vector<2x64xf32>
    tpu.vector_store %arg12[%c14_86, %c0_87], %109 {strides = array<i32>} : memref<16x128xf32, #tpu.memory_space<vmem>>, vector<2x64xf32>,
    %c0_88 = arith.constant 0 : index
    %c64_89 = arith.constant 64 : index
    %111 = vector.load %arg12[%c0_88, %c64_89] : memref<16x128xf32, #tpu.memory_space<vmem>>, vector<2x64xf32>
    tpu.vector_store %arg12[%c0_88, %c64_89], %109 {strides = array<i32>} : memref<16x128xf32, #tpu.memory_space<vmem>>, vector<2x64xf32>,
    %c0_90 = arith.constant 0 : index
    %c0_91 = arith.constant 0 : index
    %112 = vector.load %arg12[%c0_90, %c0_91] : memref<16x128xf32, #tpu.memory_space<vmem>>, vector<16x128xf32>
    %c0_92 = arith.constant 0 : index
    %c0_93 = arith.constant 0 : index
    %113 = vector.load %arg7[%c0_92, %c0_93] : memref<128x64xf32, #tpu.memory_space<vmem>>, vector<128x64xf32>
    %c0_94 = arith.constant 0 : index
    %c0_95 = arith.constant 0 : index
    %114 = vector.load %arg8[%c0_94, %c0_95] : memref<64x64xf32, #tpu.memory_space<vmem>>, vector<64x64xf32>
    %c0_96 = arith.constant 0 : index
    %c0_97 = arith.constant 0 : index
    %115 = vector.load %arg9[%c0_96, %c0_97] : memref<1x64xf32, #tpu.memory_space<vmem>>, vector<1x64xf32>
    %cst_98 = arith.constant dense<0.000000e+00> : vector<16x64xf32>
    %116 = tpu.matmul %112, %113, %cst_98 {dimension_numbers = #tpu.dot_dimension_numbers<[1], [0], [0], [1], [0, 0, 1, 1], [], []>} : vector<16x128xf32>, vector<128x64xf32>, vector<16x64xf32> -> vector<16x64xf32>
    %117 = vector.broadcast %115 : vector<1x64xf32> to vector<16x64xf32>
    %118 = arith.addf %116, %117 : vector<16x64xf32>
    %cst_99 = arith.constant 0.000000e+00 : f32
    %119 = vector.broadcast %cst_99 : f32 to vector<2x64xf32>
    %cst_100 = arith.constant dense<0.000000e+00> : vector<2x64xf32>
    %120 = tpu.matmul %119, %114, %cst_100 {dimension_numbers = #tpu.dot_dimension_numbers<[1], [0], [0], [1], [0, 0, 1, 1], [], []>} : vector<2x64xf32>, vector<64x64xf32>, vector<2x64xf32> -> vector<2x64xf32>
    %121 = vector.extract_strided_slice %118 {offsets = [0, 0], sizes = [2, 64], strides = [1, 1]} : vector<16x64xf32> to vector<2x64xf32>
    %122 = arith.addf %120, %121 : vector<2x64xf32>
    %123 = math.tanh %122 : vector<2x64xf32>
    %124 = vector.extract_strided_slice %123 {offsets = [0, 0], sizes = [1, 32], strides = [1, 1]} : vector<2x64xf32> to vector<1x32xf32>
    %c0_101 = arith.constant 0 : index
    %c0_102 = arith.constant 0 : index
    %125 = vector.load %arg13[%c0_101, %c0_102] : memref<8x64xf32, #tpu.memory_space<vmem>>, vector<1x32xf32>
    tpu.vector_store %arg13[%c0_101, %c0_102], %124 {strides = array<i32>} : memref<8x64xf32, #tpu.memory_space<vmem>>, vector<1x32xf32>,
    %126 = vector.extract_strided_slice %123 {offsets = [0, 32], sizes = [1, 32], strides = [1, 1]} : vector<2x64xf32> to vector<1x32xf32>
    %c7 = arith.constant 7 : index
    %c32 = arith.constant 32 : index
    %127 = vector.load %arg13[%c7, %c32] : memref<8x64xf32, #tpu.memory_space<vmem>>, vector<1x32xf32>
    tpu.vector_store %arg13[%c7, %c32], %126 {strides = array<i32>} : memref<8x64xf32, #tpu.memory_space<vmem>>, vector<1x32xf32>,
    %cst_103 = arith.constant dense<0.000000e+00> : vector<2x64xf32>
    %128 = tpu.matmul %123, %114, %cst_103 {dimension_numbers = #tpu.dot_dimension_numbers<[1], [0], [0], [1], [0, 0, 1, 1], [], []>} : vector<2x64xf32>, vector<64x64xf32>, vector<2x64xf32> -> vector<2x64xf32>
    %129 = vector.extract_strided_slice %118 {offsets = [2, 0], sizes = [2, 64], strides = [1, 1]} : vector<16x64xf32> to vector<2x64xf32>
    %130 = arith.addf %128, %129 : vector<2x64xf32>
    %131 = math.tanh %130 : vector<2x64xf32>
    %132 = vector.extract_strided_slice %131 {offsets = [0, 0], sizes = [1, 32], strides = [1, 1]} : vector<2x64xf32> to vector<1x32xf32>
    %c1 = arith.constant 1 : index
    %c0_104 = arith.constant 0 : index
    %133 = vector.load %arg13[%c1, %c0_104] : memref<8x64xf32, #tpu.memory_space<vmem>>, vector<1x32xf32>
    tpu.vector_store %arg13[%c1, %c0_104], %132 {strides = array<i32>} : memref<8x64xf32, #tpu.memory_space<vmem>>, vector<1x32xf32>,
    %134 = vector.extract_strided_slice %131 {offsets = [0, 32], sizes = [1, 32], strides = [1, 1]} : vector<2x64xf32> to vector<1x32xf32>
    %c6_105 = arith.constant 6 : index
    %c32_106 = arith.constant 32 : index
    %135 = vector.load %arg13[%c6_105, %c32_106] : memref<8x64xf32, #tpu.memory_space<vmem>>, vector<1x32xf32>
    tpu.vector_store %arg13[%c6_105, %c32_106], %134 {strides = array<i32>} : memref<8x64xf32, #tpu.memory_space<vmem>>, vector<1x32xf32>,
    %cst_107 = arith.constant dense<0.000000e+00> : vector<2x64xf32>
    %136 = tpu.matmul %131, %114, %cst_107 {dimension_numbers = #tpu.dot_dimension_numbers<[1], [0], [0], [1], [0, 0, 1, 1], [], []>} : vector<2x64xf32>, vector<64x64xf32>, vector<2x64xf32> -> vector<2x64xf32>
    %137 = vector.extract_strided_slice %118 {offsets = [4, 0], sizes = [2, 64], strides = [1, 1]} : vector<16x64xf32> to vector<2x64xf32>
    %138 = arith.addf %136, %137 : vector<2x64xf32>
    %139 = math.tanh %138 : vector<2x64xf32>
    %140 = vector.extract_strided_slice %139 {offsets = [0, 0], sizes = [1, 32], strides = [1, 1]} : vector<2x64xf32> to vector<1x32xf32>
    %c2_108 = arith.constant 2 : index
    %c0_109 = arith.constant 0 : index
    %141 = vector.load %arg13[%c2_108, %c0_109] : memref<8x64xf32, #tpu.memory_space<vmem>>, vector<1x32xf32>
    tpu.vector_store %arg13[%c2_108, %c0_109], %140 {strides = array<i32>} : memref<8x64xf32, #tpu.memory_space<vmem>>, vector<1x32xf32>,
    %142 = vector.extract_strided_slice %139 {offsets = [0, 32], sizes = [1, 32], strides = [1, 1]} : vector<2x64xf32> to vector<1x32xf32>
    %c5 = arith.constant 5 : index
    %c32_110 = arith.constant 32 : index
    %143 = vector.load %arg13[%c5, %c32_110] : memref<8x64xf32, #tpu.memory_space<vmem>>, vector<1x32xf32>
    tpu.vector_store %arg13[%c5, %c32_110], %142 {strides = array<i32>} : memref<8x64xf32, #tpu.memory_space<vmem>>, vector<1x32xf32>,
    %cst_111 = arith.constant dense<0.000000e+00> : vector<2x64xf32>
    %144 = tpu.matmul %139, %114, %cst_111 {dimension_numbers = #tpu.dot_dimension_numbers<[1], [0], [0], [1], [0, 0, 1, 1], [], []>} : vector<2x64xf32>, vector<64x64xf32>, vector<2x64xf32> -> vector<2x64xf32>
    %145 = vector.extract_strided_slice %118 {offsets = [6, 0], sizes = [2, 64], strides = [1, 1]} : vector<16x64xf32> to vector<2x64xf32>
    %146 = arith.addf %144, %145 : vector<2x64xf32>
    %147 = math.tanh %146 : vector<2x64xf32>
    %148 = vector.extract_strided_slice %147 {offsets = [0, 0], sizes = [1, 32], strides = [1, 1]} : vector<2x64xf32> to vector<1x32xf32>
    %c3 = arith.constant 3 : index
    %c0_112 = arith.constant 0 : index
    %149 = vector.load %arg13[%c3, %c0_112] : memref<8x64xf32, #tpu.memory_space<vmem>>, vector<1x32xf32>
    tpu.vector_store %arg13[%c3, %c0_112], %148 {strides = array<i32>} : memref<8x64xf32, #tpu.memory_space<vmem>>, vector<1x32xf32>,
    %150 = vector.extract_strided_slice %147 {offsets = [0, 32], sizes = [1, 32], strides = [1, 1]} : vector<2x64xf32> to vector<1x32xf32>
    %c4_113 = arith.constant 4 : index
    %c32_114 = arith.constant 32 : index
    %151 = vector.load %arg13[%c4_113, %c32_114] : memref<8x64xf32, #tpu.memory_space<vmem>>, vector<1x32xf32>
    tpu.vector_store %arg13[%c4_113, %c32_114], %150 {strides = array<i32>} : memref<8x64xf32, #tpu.memory_space<vmem>>, vector<1x32xf32>,
    %cst_115 = arith.constant dense<0.000000e+00> : vector<2x64xf32>
    %152 = tpu.matmul %147, %114, %cst_115 {dimension_numbers = #tpu.dot_dimension_numbers<[1], [0], [0], [1], [0, 0, 1, 1], [], []>} : vector<2x64xf32>, vector<64x64xf32>, vector<2x64xf32> -> vector<2x64xf32>
    %153 = vector.extract_strided_slice %118 {offsets = [8, 0], sizes = [2, 64], strides = [1, 1]} : vector<16x64xf32> to vector<2x64xf32>
    %154 = arith.addf %152, %153 : vector<2x64xf32>
    %155 = math.tanh %154 : vector<2x64xf32>
    %156 = vector.extract_strided_slice %155 {offsets = [0, 0], sizes = [1, 32], strides = [1, 1]} : vector<2x64xf32> to vector<1x32xf32>
    %c4_116 = arith.constant 4 : index
    %c0_117 = arith.constant 0 : index
    %157 = vector.load %arg13[%c4_116, %c0_117] : memref<8x64xf32, #tpu.memory_space<vmem>>, vector<1x32xf32>
    tpu.vector_store %arg13[%c4_116, %c0_117], %156 {strides = array<i32>} : memref<8x64xf32, #tpu.memory_space<vmem>>, vector<1x32xf32>,
    %158 = vector.extract_strided_slice %155 {offsets = [0, 32], sizes = [1, 32], strides = [1, 1]} : vector<2x64xf32> to vector<1x32xf32>
    %c3_118 = arith.constant 3 : index
    %c32_119 = arith.constant 32 : index
    %159 = vector.load %arg13[%c3_118, %c32_119] : memref<8x64xf32, #tpu.memory_space<vmem>>, vector<1x32xf32>
    tpu.vector_store %arg13[%c3_118, %c32_119], %158 {strides = array<i32>} : memref<8x64xf32, #tpu.memory_space<vmem>>, vector<1x32xf32>,
    %cst_120 = arith.constant dense<0.000000e+00> : vector<2x64xf32>
    %160 = tpu.matmul %155, %114, %cst_120 {dimension_numbers = #tpu.dot_dimension_numbers<[1], [0], [0], [1], [0, 0, 1, 1], [], []>} : vector<2x64xf32>, vector<64x64xf32>, vector<2x64xf32> -> vector<2x64xf32>
    %161 = vector.extract_strided_slice %118 {offsets = [10, 0], sizes = [2, 64], strides = [1, 1]} : vector<16x64xf32> to vector<2x64xf32>
    %162 = arith.addf %160, %161 : vector<2x64xf32>
    %163 = math.tanh %162 : vector<2x64xf32>
    %164 = vector.extract_strided_slice %163 {offsets = [0, 0], sizes = [1, 32], strides = [1, 1]} : vector<2x64xf32> to vector<1x32xf32>
    %c5_121 = arith.constant 5 : index
    %c0_122 = arith.constant 0 : index
    %165 = vector.load %arg13[%c5_121, %c0_122] : memref<8x64xf32, #tpu.memory_space<vmem>>, vector<1x32xf32>
    tpu.vector_store %arg13[%c5_121, %c0_122], %164 {strides = array<i32>} : memref<8x64xf32, #tpu.memory_space<vmem>>, vector<1x32xf32>,
    %166 = vector.extract_strided_slice %163 {offsets = [0, 32], sizes = [1, 32], strides = [1, 1]} : vector<2x64xf32> to vector<1x32xf32>
    %c2_123 = arith.constant 2 : index
    %c32_124 = arith.constant 32 : index
    %167 = vector.load %arg13[%c2_123, %c32_124] : memref<8x64xf32, #tpu.memory_space<vmem>>, vector<1x32xf32>
    tpu.vector_store %arg13[%c2_123, %c32_124], %166 {strides = array<i32>} : memref<8x64xf32, #tpu.memory_space<vmem>>, vector<1x32xf32>,
    %cst_125 = arith.constant dense<0.000000e+00> : vector<2x64xf32>
    %168 = tpu.matmul %163, %114, %cst_125 {dimension_numbers = #tpu.dot_dimension_numbers<[1], [0], [0], [1], [0, 0, 1, 1], [], []>} : vector<2x64xf32>, vector<64x64xf32>, vector<2x64xf32> -> vector<2x64xf32>
    %169 = vector.extract_strided_slice %118 {offsets = [12, 0], sizes = [2, 64], strides = [1, 1]} : vector<16x64xf32> to vector<2x64xf32>
    %170 = arith.addf %168, %169 : vector<2x64xf32>
    %171 = math.tanh %170 : vector<2x64xf32>
    %172 = vector.extract_strided_slice %171 {offsets = [0, 0], sizes = [1, 32], strides = [1, 1]} : vector<2x64xf32> to vector<1x32xf32>
    %c6_126 = arith.constant 6 : index
    %c0_127 = arith.constant 0 : index
    %173 = vector.load %arg13[%c6_126, %c0_127] : memref<8x64xf32, #tpu.memory_space<vmem>>, vector<1x32xf32>
    tpu.vector_store %arg13[%c6_126, %c0_127], %172 {strides = array<i32>} : memref<8x64xf32, #tpu.memory_space<vmem>>, vector<1x32xf32>,
    %174 = vector.extract_strided_slice %171 {offsets = [0, 32], sizes = [1, 32], strides = [1, 1]} : vector<2x64xf32> to vector<1x32xf32>
    %c1_128 = arith.constant 1 : index
    %c32_129 = arith.constant 32 : index
    %175 = vector.load %arg13[%c1_128, %c32_129] : memref<8x64xf32, #tpu.memory_space<vmem>>, vector<1x32xf32>
    tpu.vector_store %arg13[%c1_128, %c32_129], %174 {strides = array<i32>} : memref<8x64xf32, #tpu.memory_space<vmem>>, vector<1x32xf32>,
    %cst_130 = arith.constant dense<0.000000e+00> : vector<2x64xf32>
    %176 = tpu.matmul %171, %114, %cst_130 {dimension_numbers = #tpu.dot_dimension_numbers<[1], [0], [0], [1], [0, 0, 1, 1], [], []>} : vector<2x64xf32>, vector<64x64xf32>, vector<2x64xf32> -> vector<2x64xf32>
    %177 = vector.extract_strided_slice %118 {offsets = [14, 0], sizes = [2, 64], strides = [1, 1]} : vector<16x64xf32> to vector<2x64xf32>
    %178 = arith.addf %176, %177 : vector<2x64xf32>
    %179 = math.tanh %178 : vector<2x64xf32>
    %180 = vector.extract_strided_slice %179 {offsets = [0, 0], sizes = [1, 32], strides = [1, 1]} : vector<2x64xf32> to vector<1x32xf32>
    %c7_131 = arith.constant 7 : index
    %c0_132 = arith.constant 0 : index
    %181 = vector.load %arg13[%c7_131, %c0_132] : memref<8x64xf32, #tpu.memory_space<vmem>>, vector<1x32xf32>
    tpu.vector_store %arg13[%c7_131, %c0_132], %180 {strides = array<i32>} : memref<8x64xf32, #tpu.memory_space<vmem>>, vector<1x32xf32>,
    %182 = vector.extract_strided_slice %179 {offsets = [0, 32], sizes = [1, 32], strides = [1, 1]} : vector<2x64xf32> to vector<1x32xf32>
    %c0_133 = arith.constant 0 : index
    %c32_134 = arith.constant 32 : index
    %183 = vector.load %arg13[%c0_133, %c32_134] : memref<8x64xf32, #tpu.memory_space<vmem>>, vector<1x32xf32>
    tpu.vector_store %arg13[%c0_133, %c32_134], %182 {strides = array<i32>} : memref<8x64xf32, #tpu.memory_space<vmem>>, vector<1x32xf32>,
    %c0_135 = arith.constant 0 : index
    %c0_136 = arith.constant 0 : index
    %184 = vector.load %arg13[%c0_135, %c0_136] : memref<8x64xf32, #tpu.memory_space<vmem>>, vector<8x32xf32>
    %c0_137 = arith.constant 0 : index
    %c32_138 = arith.constant 32 : index
    %185 = vector.load %arg13[%c0_137, %c32_138] : memref<8x64xf32, #tpu.memory_space<vmem>>, vector<8x32xf32>
    %186 = arith.addf %184, %185 : vector<8x32xf32>
    %cst_139 = arith.constant 5.000000e-01 : f32
    %187 = vector.broadcast %cst_139 : f32 to vector<8x32xf32>
    %188 = arith.mulf %187, %186 : vector<8x32xf32>
    %c0_140 = arith.constant 0 : index
    %c0_141 = arith.constant 0 : index
    %189 = vector.load %arg10[%c0_140, %c0_141] : memref<8x32xf32, #tpu.memory_space<vmem>>, vector<8x32xf32>
    tpu.vector_store %arg10[%c0_140, %c0_141], %188 {strides = array<i32>} : memref<8x32xf32, #tpu.memory_space<vmem>>, vector<8x32xf32>,
    return
  }
}

</mosaic_0001>

<llo_original>
// kernel: simple_rnn_base_forward.1
$region0: #{simple_rnn_base_forward.1}
  #allocation0 [shape = 'u32[]', space=smem, size = 0x4, offset = 0x4, fixed_abs, tag = 'smem constant byte address 0x4 - core index']
  #allocation1 [shape = 'u32[144,128]{1,0:T(1,128)}', space=vmem, size = 0x12000, scoped, tag = 'internal scratch']
  #allocation2 [shape = 'f32[16,128]{1,0:T(8,128)}', space=vmem, size = 0x2000, scoped, tag = 'scratch operand']
  #allocation3 [shape = 'f32[16,128]{1,0:T(8,128)}', space=vmem, size = 0x2000, scoped, tag = 'scratch operand']
  #allocation4 [shape = 'f32[8,64]{1,0:T(8,128)}', space=vmem, size = 0x1000, scoped, tag = 'scratch operand']
  %s0 = inlined_call_operand.vmem [shape: f32[16,64], index: 0, kind: input, shape index: {}]
  %s1 = inlined_call_operand.vmem [shape: f32[64,64], index: 1, kind: input, shape index: {}]
  %s2 = inlined_call_operand.vmem [shape: f32[64,64], index: 2, kind: input, shape index: {}]
  %s3 = inlined_call_operand.vmem [shape: f32[1,64], index: 3, kind: input, shape index: {}]
  %s4 = inlined_call_operand.vmem [shape: f32[128,64], index: 4, kind: input, shape index: {}]
  %s5 = inlined_call_operand.vmem [shape: f32[64,64], index: 5, kind: input, shape index: {}]
  %s6 = inlined_call_operand.vmem [shape: f32[1,64], index: 6, kind: input, shape index: {}]
  %s7 = inlined_call_operand.vmem [shape: f32[128,64], index: 7, kind: input, shape index: {}]
  %s8 = inlined_call_operand.vmem [shape: f32[64,64], index: 8, kind: input, shape index: {}]
  %s9 = inlined_call_operand.vmem [shape: f32[1,64], index: 9, kind: input, shape index: {}]
  %s10 = inlined_call_operand.hbm [shape: f32[8,32], index: 10, kind: output, shape index: {}]
  %s11 = sld [smem:[#allocation0]]
  $region50: #{simple_rnn_base_forward.1} parent=0
    _
  %s13 = ssub.s32 1, %s11
  %s14 = scalar_select 0, %s13, %s11
  $region1: #{simple_rnn_base_forward.1} parent=0
    #allocation5 [shape = 'u8[4096]{0}', space=vmem, size = 0x1000, scoped, tag = 'output window, operand 0, single buffered']
    #allocation6 [shape = 's32[1]{0}', space=sflag, size = 0x4, scoped, tag = 'scoped memory for simple_rnn_base_forward.1']
    %15 = vsyncpa [#allocation6], 0
    // Predicated region
    $region2: #{simple_rnn_base_forward.1} parent=1 // pred_check
      _
    $region3: #{simple_rnn_base_forward.1} parent=1 // pred_check_branch
      %17 = sbr.rel (0) target = $region5
    $region4: #{simple_rnn_base_forward.1} parent=1 // pred_region
      _
    $region5: #{simple_rnn_base_forward.1} parent=1 // pred_fallthru
      _
    // Predicated region
    $region6: #{simple_rnn_base_forward.1} parent=1 // pred_check
      _
    $region7: #{simple_rnn_base_forward.1} parent=1 // pred_check_branch
      %19 = sbr.rel (0) target = $region9
    $region8: #{simple_rnn_base_forward.1} parent=1 // pred_region
      _
    $region9: #{simple_rnn_base_forward.1} parent=1 // pred_fallthru
      _
    // Predicated region
    $region10: #{simple_rnn_base_forward.1} parent=1 // pred_check
      _
    $region11: #{simple_rnn_base_forward.1} parent=1 // pred_check_branch
      %21 = sbr.rel (0) target = $region13
    $region12: #{simple_rnn_base_forward.1} parent=1 // pred_region
      _
    $region13: #{simple_rnn_base_forward.1} parent=1 // pred_fallthru
      _
    // Predicated region
    $region14: #{simple_rnn_base_forward.1} parent=1 // pred_check
      _
    $region15: #{simple_rnn_base_forward.1} parent=1 // pred_check_branch
      %23 = sbr.rel (0) target = $region17
    $region16: #{simple_rnn_base_forward.1} parent=1 // pred_region
      _
    $region17: #{simple_rnn_base_forward.1} parent=1 // pred_fallthru
      _
    // Predicated region
    $region18: #{simple_rnn_base_forward.1} parent=1 // pred_check
      _
    $region19: #{simple_rnn_base_forward.1} parent=1 // pred_check_branch
      %25 = sbr.rel (0) target = $region21
    $region20: #{simple_rnn_base_forward.1} parent=1 // pred_region
      _
    $region21: #{simple_rnn_base_forward.1} parent=1 // pred_fallthru
      _
    // Predicated region
    $region22: #{simple_rnn_base_forward.1} parent=1 // pred_check
      _
    $region23: #{simple_rnn_base_forward.1} parent=1 // pred_check_branch
      %27 = sbr.rel (0) target = $region25
    $region24: #{simple_rnn_base_forward.1} parent=1 // pred_region
      _
    $region25: #{simple_rnn_base_forward.1} parent=1 // pred_fallthru
      _
    // Predicated region
    $region26: #{simple_rnn_base_forward.1} parent=1 // pred_check
      _
    $region27: #{simple_rnn_base_forward.1} parent=1 // pred_check_branch
      %29 = sbr.rel (0) target = $region29
    $region28: #{simple_rnn_base_forward.1} parent=1 // pred_region
      _
    $region29: #{simple_rnn_base_forward.1} parent=1 // pred_fallthru
      _
    // Predicated region
    $region30: #{simple_rnn_base_forward.1} parent=1 // pred_check
      _
    $region31: #{simple_rnn_base_forward.1} parent=1 // pred_check_branch
      %31 = sbr.rel (0) target = $region33
    $region32: #{simple_rnn_base_forward.1} parent=1 // pred_region
      _
    $region33: #{simple_rnn_base_forward.1} parent=1 // pred_fallthru
      _
    // Predicated region
    $region34: #{simple_rnn_base_forward.1} parent=1 // pred_check
      _
    $region35: #{simple_rnn_base_forward.1} parent=1 // pred_check_branch
      %33 = sbr.rel (0) target = $region37
    $region36: #{simple_rnn_base_forward.1} parent=1 // pred_region
      _
    $region37: #{simple_rnn_base_forward.1} parent=1 // pred_fallthru
      _
    // Predicated region
    $region38: #{simple_rnn_base_forward.1} parent=1 // pred_check
      _
    $region39: #{simple_rnn_base_forward.1} parent=1 // pred_check_branch
      %35 = sbr.rel (0) target = $region41
    $region40: #{simple_rnn_base_forward.1} parent=1 // pred_region
      _
    $region41: #{simple_rnn_base_forward.1} parent=1 // pred_fallthru
      _
    %v36 = vld [vmem:[%s0] sm:$0xff]
    %v37 = vld [vmem:[%s0 + $0x8] sm:$0xff]
    %v38 = vld [vmem:[%s1] sm:$0xff]
    %v39 = vld [vmem:[%s1 + $0x8] sm:$0xff]
    %v40 = vld [vmem:[%s1 + $0x10] sm:$0xff]
    %v41 = vld [vmem:[%s1 + $0x18] sm:$0xff]
    %v42 = vld [vmem:[%s1 + $0x20] sm:$0xff]
    %v43 = vld [vmem:[%s1 + $0x28] sm:$0xff]
    %v44 = vld [vmem:[%s1 + $0x30] sm:$0xff]
    %v45 = vld [vmem:[%s1 + $0x38] sm:$0xff]
    %v46 = vld [vmem:[%s2] sm:$0xff]
    %v47 = vld [vmem:[%s2 + $0x8] sm:$0xff]
    %v48 = vld [vmem:[%s2 + $0x10] sm:$0xff]
    %v49 = vld [vmem:[%s2 + $0x18] sm:$0xff]
    %v50 = vld [vmem:[%s2 + $0x20] sm:$0xff]
    %v51 = vld [vmem:[%s2 + $0x28] sm:$0xff]
    %v52 = vld [vmem:[%s2 + $0x30] sm:$0xff]
    %v53 = vld [vmem:[%s2 + $0x38] sm:$0xff]
    %v54 = vld [vmem:[%s3] sm:$0x1]
    %v56 = vlaneseq
    %v57 = vshrl.u32 %v56, 7
    %v58 = vsub.s32 0, %v57
    %v59 = vrot.slane %v54, %v58
    %vm61 = vcmask 523264
    %v63 = vsel %vm61, %v36, 0
    %v66 = vsel %vm61, %v37, 0
    %68 = vmatprep.subr.mxu0 0.0
    %69 = vmatpush1.msra.mxu0 %v38
    %70 = vmatprep.subr.mxu0 0.0
    %71 = vmatpush1.msra.mxu0 %v39
    %72 = vmatprep.subr.mxu0 0.0
    %73 = vmatpush1.msra.mxu0 %v40
    %74 = vmatprep.subr.mxu0 0.0
    %75 = vmatpush1.msra.mxu0 %v41
    %76 = vmatprep.subr.mxu0 0.0
    %77 = vmatpush1.msra.mxu0 %v42
    %78 = vmatprep.subr.mxu0 0.0
    %79 = vmatpush1.msra.mxu0 %v43
    %80 = vmatprep.subr.mxu0 0.0
    %81 = vmatpush1.msra.mxu0 %v44
    %82 = vmatprep.subr.mxu0 0.0
    %83 = vmatpush1.msra.mxu0 %v45
    %84 = vmatprep.subr.mxu0 0.0
    %85 = vmatpush1.msra.mxu0 0.0
    %86 = vmatprep.subr.mxu0 0.0
    %87 = vmatpush1.msra.mxu0 0.0
    %88 = vmatprep.subr.mxu0 0.0
    %89 = vmatpush1.msra.mxu0 0.0
    %90 = vmatprep.subr.mxu0 0.0
    %91 = vmatpush1.msra.mxu0 0.0
    %92 = vmatprep.subr.mxu0 0.0
    %93 = vmatpush1.msra.mxu0 0.0
    %94 = vmatprep.subr.mxu0 0.0
    %95 = vmatpush1.msra.mxu0 0.0
    %96 = vmatprep.subr.mxu0 0.0
    %97 = vmatpush1.msra.mxu0 0.0
    %98 = vmatprep.subr.mxu0 0.0
    %99 = vmatpush1.msra.mxu0 0.0
    %100 = vmatprep.subr.mxu0 0.0
    %101 = vmatpush1.msra.mxu0 0.0
    %102 = vmatprep.subr.mxu0 0.0
    %103 = vmatpush1.msra.mxu0 0.0
    %104 = vmatprep.subr.mxu0 0.0
    %105 = vmatpush1.msra.mxu0 0.0
    %106 = vmatprep.subr.mxu0 0.0
    %107 = vmatpush1.msra.mxu0 0.0
    %108 = vmatprep.subr.mxu0 0.0
    %109 = vmatpush1.msra.mxu0 0.0
    %110 = vmatprep.subr.mxu0 0.0
    %111 = vmatpush1.msra.mxu0 0.0
    %112 = vmatprep.subr.mxu0 0.0
    %113 = vmatpush1.msra.mxu0 0.0
    %114 = vmatprep.subr.mxu0 0.0
    %115 = vmatpush1.msra.mxu0 0.0
    %116 = vmatprep.subr.mxu0 0.0
    %117 = vmatpush1.msra.mxu0 0.0
    %118 = vmatprep.subr.mxu0 0.0
    %119 = vmatpush1.msra.mxu0 0.0
    %120 = vmatprep.subr.mxu0 0.0
    %121 = vmatpush1.msra.mxu0 0.0
    %122 = vmatprep.subr.mxu0 0.0
    %123 = vmatpush1.msra.mxu0 0.0
    %124 = vmatprep.subr.mxu0 0.0
    %125 = vmatpush1.msra.mxu0 0.0
    %126 = vmatprep.subr.mxu0 0.0
    %127 = vmatpush1.msra.mxu0 0.0
    %128 = vmatprep.subr.mxu0 0.0
    %129 = vmatpush1.msra.mxu0 0.0
    %130 = vmatprep.subr.mxu0 0.0
    %131 = vmatpush1.msra.mxu0 0.0
    %132 = vmatprep.mubr.f32.mxu0 0.0
    %133 = vmatmul.mubr.f32.gmra.mrb[0].mxu0 %v63
    %v134 = vpop.f32.mrb[0].mxu0
    %v135 = vadd.f32 %v59, %v134
    %v136 = vpop.f32.mrb[0].mxu0
    %137 = vmatprep.mubr.f32.mxu0 0.0
    %138 = vmatmul.mubr.f32.gmra.mrb[0].mxu0 %v66
    %v139 = vpop.f32.mrb[0].mxu0
    %v140 = vadd.f32 %v59, %v139
    %v141 = vpop.f32.mrb[0].mxu0
    %142 = vdwg.mxu0
    %v144 = vsel %vm61, 0.0, 0
    %146 = vmatprep.subr.mxu0 0.0
    %147 = vmatpush1.msra.mxu0 %v46
    %148 = vmatprep.subr.mxu0 0.0
    %149 = vmatpush1.msra.mxu0 %v47
    %150 = vmatprep.subr.mxu0 0.0
    %151 = vmatpush1.msra.mxu0 %v48
    %152 = vmatprep.subr.mxu0 0.0
    %153 = vmatpush1.msra.mxu0 %v49
    %154 = vmatprep.subr.mxu0 0.0
    %155 = vmatpush1.msra.mxu0 %v50
    %156 = vmatprep.subr.mxu0 0.0
    %157 = vmatpush1.msra.mxu0 %v51
    %158 = vmatprep.subr.mxu0 0.0
    %159 = vmatpush1.msra.mxu0 %v52
    %160 = vmatprep.subr.mxu0 0.0
    %161 = vmatpush1.msra.mxu0 %v53
    %162 = vmatprep.subr.mxu0 0.0
    %163 = vmatpush1.msra.mxu0 0.0
    %164 = vmatprep.subr.mxu0 0.0
    %165 = vmatpush1.msra.mxu0 0.0
    %166 = vmatprep.subr.mxu0 0.0
    %167 = vmatpush1.msra.mxu0 0.0
    %168 = vmatprep.subr.mxu0 0.0
    %169 = vmatpush1.msra.mxu0 0.0
    %170 = vmatprep.subr.mxu0 0.0
    %171 = vmatpush1.msra.mxu0 0.0
    %172 = vmatprep.subr.mxu0 0.0
    %173 = vmatpush1.msra.mxu0 0.0
    %174 = vmatprep.subr.mxu0 0.0
    %175 = vmatpush1.msra.mxu0 0.0
    %176 = vmatprep.subr.mxu0 0.0
    %177 = vmatpush1.msra.mxu0 0.0
    %178 = vmatprep.subr.mxu0 0.0
    %179 = vmatpush1.msra.mxu0 0.0
    %180 = vmatprep.subr.mxu0 0.0
    %181 = vmatpush1.msra.mxu0 0.0
    %182 = vmatprep.subr.mxu0 0.0
    %183 = vmatpush1.msra.mxu0 0.0
    %184 = vmatprep.subr.mxu0 0.0
    %185 = vmatpush1.msra.mxu0 0.0
    %186 = vmatprep.subr.mxu0 0.0
    %187 = vmatpush1.msra.mxu0 0.0
    %188 = vmatprep.subr.mxu0 0.0
    %189 = vmatpush1.msra.mxu0 0.0
    %190 = vmatprep.subr.mxu0 0.0
    %191 = vmatpush1.msra.mxu0 0.0
    %192 = vmatprep.subr.mxu0 0.0
    %193 = vmatpush1.msra.mxu0 0.0
    %194 = vmatprep.subr.mxu0 0.0
    %195 = vmatpush1.msra.mxu0 0.0
    %196 = vmatprep.subr.mxu0 0.0
    %197 = vmatpush1.msra.mxu0 0.0
    %198 = vmatprep.subr.mxu0 0.0
    %199 = vmatpush1.msra.mxu0 0.0
    %200 = vmatprep.subr.mxu0 0.0
    %201 = vmatpush1.msra.mxu0 0.0
    %202 = vmatprep.subr.mxu0 0.0
    %203 = vmatpush1.msra.mxu0 0.0
    %204 = vmatprep.subr.mxu0 0.0
    %205 = vmatpush1.msra.mxu0 0.0
    %206 = vmatprep.subr.mxu0 0.0
    %207 = vmatpush1.msra.mxu0 0.0
    %208 = vmatprep.subr.mxu0 0.0
    %209 = vmatpush1.msra.mxu0 0.0
    %210 = vmatprep.mubr.f32.mxu0 0.0
    %211 = vmatmul.mubr.f32.gmra.mrb[0].mxu0 %v144
    %v212 = vpop.f32.mrb[0].mxu0
    %v213 = vadd.f32 %v135, %v212
    %v214 = vpop.f32.mrb[0].mxu0
    %215 = vdwg.mxu0
    %v216 = vtanh.pop %v213
    %vm217 = vcmask 517120
    %218 = vst.msk [vmem:[#allocation2] sm:$0x3] %vm217, %v216
    %220 = vrot.lane.b32.xlu0 %v216, 64
    %v221 = vpop.permute.xlu0 %220
    %vm223 = vcmask 1041920
    %224 = vst.msk [vmem:[#allocation2 + $0xe] sm:$0x3] %vm223, %v221
    %v226 = vrot.slane %v135, 2
    %v228 = vsel %vm61, %v216, 0
    %230 = vmatprep.subr.mxu0 0.0
    %231 = vmatpush1.msra.mxu0 %v46
    %232 = vmatprep.subr.mxu0 0.0
    %233 = vmatpush1.msra.mxu0 %v47
    %234 = vmatprep.subr.mxu0 0.0
    %235 = vmatpush1.msra.mxu0 %v48
    %236 = vmatprep.subr.mxu0 0.0
    %237 = vmatpush1.msra.mxu0 %v49
    %238 = vmatprep.subr.mxu0 0.0
    %239 = vmatpush1.msra.mxu0 %v50
    %240 = vmatprep.subr.mxu0 0.0
    %241 = vmatpush1.msra.mxu0 %v51
    %242 = vmatprep.subr.mxu0 0.0
    %243 = vmatpush1.msra.mxu0 %v52
    %244 = vmatprep.subr.mxu0 0.0
    %245 = vmatpush1.msra.mxu0 %v53
    %246 = vmatprep.subr.mxu0 0.0
    %247 = vmatpush1.msra.mxu0 0.0
    %248 = vmatprep.subr.mxu0 0.0
    %249 = vmatpush1.msra.mxu0 0.0
    %250 = vmatprep.subr.mxu0 0.0
    %251 = vmatpush1.msra.mxu0 0.0
    %252 = vmatprep.subr.mxu0 0.0
    %253 = vmatpush1.msra.mxu0 0.0
    %254 = vmatprep.subr.mxu0 0.0
    %255 = vmatpush1.msra.mxu0 0.0
    %256 = vmatprep.subr.mxu0 0.0
    %257 = vmatpush1.msra.mxu0 0.0
    %258 = vmatprep.subr.mxu0 0.0
    %259 = vmatpush1.msra.mxu0 0.0
    %260 = vmatprep.subr.mxu0 0.0
    %261 = vmatpush1.msra.mxu0 0.0
    %262 = vmatprep.subr.mxu0 0.0
    %263 = vmatpush1.msra.mxu0 0.0
    %264 = vmatprep.subr.mxu0 0.0
    %265 = vmatpush1.msra.mxu0 0.0
    %266 = vmatprep.subr.mxu0 0.0
    %267 = vmatpush1.msra.mxu0 0.0
    %268 = vmatprep.subr.mxu0 0.0
    %269 = vmatpush1.msra.mxu0 0.0
    %270 = vmatprep.subr.mxu0 0.0
    %271 = vmatpush1.msra.mxu0 0.0
    %272 = vmatprep.subr.mxu0 0.0
    %273 = vmatpush1.msra.mxu0 0.0
    %274 = vmatprep.subr.mxu0 0.0
    %275 = vmatpush1.msra.mxu0 0.0
    %276 = vmatprep.subr.mxu0 0.0
    %277 = vmatpush1.msra.mxu0 0.0
    %278 = vmatprep.subr.mxu0 0.0
    %279 = vmatpush1.msra.mxu0 0.0
    %280 = vmatprep.subr.mxu0 0.0
    %281 = vmatpush1.msra.mxu0 0.0
    %282 = vmatprep.subr.mxu0 0.0
    %283 = vmatpush1.msra.mxu0 0.0
    %284 = vmatprep.subr.mxu0 0.0
    %285 = vmatpush1.msra.mxu0 0.0
    %286 = vmatprep.subr.mxu0 0.0
    %287 = vmatpush1.msra.mxu0 0.0
    %288 = vmatprep.subr.mxu0 0.0
    %289 = vmatpush1.msra.mxu0 0.0
    %290 = vmatprep.subr.mxu0 0.0
    %291 = vmatpush1.msra.mxu0 0.0
    %292 = vmatprep.subr.mxu0 0.0
    %293 = vmatpush1.msra.mxu0 0.0
    %294 = vmatprep.mubr.f32.mxu0 0.0
    %295 = vmatmul.mubr.f32.gmra.mrb[0].mxu0 %v228
    %v296 = vpop.f32.mrb[0].mxu0
    %v297 = vadd.f32 %v226, %v296
    %v298 = vpop.f32.mrb[0].mxu0
    %299 = vdwg.mxu0
    %v300 = vtanh.pop %v297
    %301 = vst.msk [vmem:[#allocation2 + $0x2] sm:$0x3] %vm217, %v300
    %303 = vrot.lane.b32.xlu0 %v300, 64
    %v304 = vpop.permute.xlu0 %303
    %306 = vst.msk [vmem:[#allocation2 + $0xc] sm:$0x3] %vm223, %v304
    %v307 = vrot.slane %v135, 4
    %v309 = vsel %vm61, %v300, 0
    %311 = vmatprep.subr.mxu0 0.0
    %312 = vmatpush1.msra.mxu0 %v46
    %313 = vmatprep.subr.mxu0 0.0
    %314 = vmatpush1.msra.mxu0 %v47
    %315 = vmatprep.subr.mxu0 0.0
    %316 = vmatpush1.msra.mxu0 %v48
    %317 = vmatprep.subr.mxu0 0.0
    %318 = vmatpush1.msra.mxu0 %v49
    %319 = vmatprep.subr.mxu0 0.0
    %320 = vmatpush1.msra.mxu0 %v50
    %321 = vmatprep.subr.mxu0 0.0
    %322 = vmatpush1.msra.mxu0 %v51
    %323 = vmatprep.subr.mxu0 0.0
    %324 = vmatpush1.msra.mxu0 %v52
    %325 = vmatprep.subr.mxu0 0.0
    %326 = vmatpush1.msra.mxu0 %v53
    %327 = vmatprep.subr.mxu0 0.0
    %328 = vmatpush1.msra.mxu0 0.0
    %329 = vmatprep.subr.mxu0 0.0
    %330 = vmatpush1.msra.mxu0 0.0
    %331 = vmatprep.subr.mxu0 0.0
    %332 = vmatpush1.msra.mxu0 0.0
    %333 = vmatprep.subr.mxu0 0.0
    %334 = vmatpush1.msra.mxu0 0.0
    %335 = vmatprep.subr.mxu0 0.0
    %336 = vmatpush1.msra.mxu0 0.0
    %337 = vmatprep.subr.mxu0 0.0
    %338 = vmatpush1.msra.mxu0 0.0
    %339 = vmatprep.subr.mxu0 0.0
    %340 = vmatpush1.msra.mxu0 0.0
    %341 = vmatprep.subr.mxu0 0.0
    %342 = vmatpush1.msra.mxu0 0.0
    %343 = vmatprep.subr.mxu0 0.0
    %344 = vmatpush1.msra.mxu0 0.0
    %345 = vmatprep.subr.mxu0 0.0
    %346 = vmatpush1.msra.mxu0 0.0
    %347 = vmatprep.subr.mxu0 0.0
    %348 = vmatpush1.msra.mxu0 0.0
    %349 = vmatprep.subr.mxu0 0.0
    %350 = vmatpush1.msra.mxu0 0.0
    %351 = vmatprep.subr.mxu0 0.0
    %352 = vmatpush1.msra.mxu0 0.0
    %353 = vmatprep.subr.mxu0 0.0
    %354 = vmatpush1.msra.mxu0 0.0
    %355 = vmatprep.subr.mxu0 0.0
    %356 = vmatpush1.msra.mxu0 0.0
    %357 = vmatprep.subr.mxu0 0.0
    %358 = vmatpush1.msra.mxu0 0.0
    %359 = vmatprep.subr.mxu0 0.0
    %360 = vmatpush1.msra.mxu0 0.0
    %361 = vmatprep.subr.mxu0 0.0
    %362 = vmatpush1.msra.mxu0 0.0
    %363 = vmatprep.subr.mxu0 0.0
    %364 = vmatpush1.msra.mxu0 0.0
    %365 = vmatprep.subr.mxu0 0.0
    %366 = vmatpush1.msra.mxu0 0.0
    %367 = vmatprep.subr.mxu0 0.0
    %368 = vmatpush1.msra.mxu0 0.0
    %369 = vmatprep.subr.mxu0 0.0
    %370 = vmatpush1.msra.mxu0 0.0
    %371 = vmatprep.subr.mxu0 0.0
    %372 = vmatpush1.msra.mxu0 0.0
    %373 = vmatprep.subr.mxu0 0.0
    %374 = vmatpush1.msra.mxu0 0.0
    %375 = vmatprep.mubr.f32.mxu0 0.0
    %376 = vmatmul.mubr.f32.gmra.mrb[0].mxu0 %v309
    %v377 = vpop.f32.mrb[0].mxu0
    %v378 = vadd.f32 %v307, %v377
    %v379 = vpop.f32.mrb[0].mxu0
    %380 = vdwg.mxu0
    %v381 = vtanh.pop %v378
    %382 = vst.msk [vmem:[#allocation2 + $0x4] sm:$0x3] %vm217, %v381
    %384 = vrot.lane.b32.xlu0 %v381, 64
    %v385 = vpop.permute.xlu0 %384
    %387 = vst.msk [vmem:[#allocation2 + $0xa] sm:$0x3] %vm223, %v385
    %v388 = vrot.slane %v135, 6
    %v390 = vsel %vm61, %v381, 0
    %392 = vmatprep.subr.mxu0 0.0
    %393 = vmatpush1.msra.mxu0 %v46
    %394 = vmatprep.subr.mxu0 0.0
    %395 = vmatpush1.msra.mxu0 %v47
    %396 = vmatprep.subr.mxu0 0.0
    %397 = vmatpush1.msra.mxu0 %v48
    %398 = vmatprep.subr.mxu0 0.0
    %399 = vmatpush1.msra.mxu0 %v49
    %400 = vmatprep.subr.mxu0 0.0
    %401 = vmatpush1.msra.mxu0 %v50
    %402 = vmatprep.subr.mxu0 0.0
    %403 = vmatpush1.msra.mxu0 %v51
    %404 = vmatprep.subr.mxu0 0.0
    %405 = vmatpush1.msra.mxu0 %v52
    %406 = vmatprep.subr.mxu0 0.0
    %407 = vmatpush1.msra.mxu0 %v53
    %408 = vmatprep.subr.mxu0 0.0
    %409 = vmatpush1.msra.mxu0 0.0
    %410 = vmatprep.subr.mxu0 0.0
    %411 = vmatpush1.msra.mxu0 0.0
    %412 = vmatprep.subr.mxu0 0.0
    %413 = vmatpush1.msra.mxu0 0.0
    %414 = vmatprep.subr.mxu0 0.0
    %415 = vmatpush1.msra.mxu0 0.0
    %416 = vmatprep.subr.mxu0 0.0
    %417 = vmatpush1.msra.mxu0 0.0
    %418 = vmatprep.subr.mxu0 0.0
    %419 = vmatpush1.msra.mxu0 0.0
    %420 = vmatprep.subr.mxu0 0.0
    %421 = vmatpush1.msra.mxu0 0.0
    %422 = vmatprep.subr.mxu0 0.0
    %423 = vmatpush1.msra.mxu0 0.0
    %424 = vmatprep.subr.mxu0 0.0
    %425 = vmatpush1.msra.mxu0 0.0
    %426 = vmatprep.subr.mxu0 0.0
    %427 = vmatpush1.msra.mxu0 0.0
    %428 = vmatprep.subr.mxu0 0.0
    %429 = vmatpush1.msra.mxu0 0.0
    %430 = vmatprep.subr.mxu0 0.0
    %431 = vmatpush1.msra.mxu0 0.0
    %432 = vmatprep.subr.mxu0 0.0
    %433 = vmatpush1.msra.mxu0 0.0
    %434 = vmatprep.subr.mxu0 0.0
    %435 = vmatpush1.msra.mxu0 0.0
    %436 = vmatprep.subr.mxu0 0.0
    %437 = vmatpush1.msra.mxu0 0.0
    %438 = vmatprep.subr.mxu0 0.0
    %439 = vmatpush1.msra.mxu0 0.0
    %440 = vmatprep.subr.mxu0 0.0
    %441 = vmatpush1.msra.mxu0 0.0
    %442 = vmatprep.subr.mxu0 0.0
    %443 = vmatpush1.msra.mxu0 0.0
    %444 = vmatprep.subr.mxu0 0.0
    %445 = vmatpush1.msra.mxu0 0.0
    %446 = vmatprep.subr.mxu0 0.0
    %447 = vmatpush1.msra.mxu0 0.0
    %448 = vmatprep.subr.mxu0 0.0
    %449 = vmatpush1.msra.mxu0 0.0
    %450 = vmatprep.subr.mxu0 0.0
    %451 = vmatpush1.msra.mxu0 0.0
    %452 = vmatprep.subr.mxu0 0.0
    %453 = vmatpush1.msra.mxu0 0.0
    %454 = vmatprep.subr.mxu0 0.0
    %455 = vmatpush1.msra.mxu0 0.0
    %456 = vmatprep.mubr.f32.mxu0 0.0
    %457 = vmatmul.mubr.f32.gmra.mrb[0].mxu0 %v390
    %v458 = vpop.f32.mrb[0].mxu0
    %v459 = vadd.f32 %v388, %v458
    %v460 = vpop.f32.mrb[0].mxu0
    %461 = vdwg.mxu0
    %v462 = vtanh.pop %v459
    %463 = vst.msk [vmem:[#allocation2 + $0x6] sm:$0x3] %vm217, %v462
    %465 = vrot.lane.b32.xlu0 %v462, 64
    %v466 = vpop.permute.xlu0 %465
    %468 = vst.msk [vmem:[#allocation2 + $0x8] sm:$0x3] %vm223, %v466
    %v469 = vsel %vm61, %v462, 0
    %471 = vmatprep.subr.mxu0 0.0
    %472 = vmatpush1.msra.mxu0 %v46
    %473 = vmatprep.subr.mxu0 0.0
    %474 = vmatpush1.msra.mxu0 %v47
    %475 = vmatprep.subr.mxu0 0.0
    %476 = vmatpush1.msra.mxu0 %v48
    %477 = vmatprep.subr.mxu0 0.0
    %478 = vmatpush1.msra.mxu0 %v49
    %479 = vmatprep.subr.mxu0 0.0
    %480 = vmatpush1.msra.mxu0 %v50
    %481 = vmatprep.subr.mxu0 0.0
    %482 = vmatpush1.msra.mxu0 %v51
    %483 = vmatprep.subr.mxu0 0.0
    %484 = vmatpush1.msra.mxu0 %v52
    %485 = vmatprep.subr.mxu0 0.0
    %486 = vmatpush1.msra.mxu0 %v53
    %487 = vmatprep.subr.mxu0 0.0
    %488 = vmatpush1.msra.mxu0 0.0
    %489 = vmatprep.subr.mxu0 0.0
    %490 = vmatpush1.msra.mxu0 0.0
    %491 = vmatprep.subr.mxu0 0.0
    %492 = vmatpush1.msra.mxu0 0.0
    %493 = vmatprep.subr.mxu0 0.0
    %494 = vmatpush1.msra.mxu0 0.0
    %495 = vmatprep.subr.mxu0 0.0
    %496 = vmatpush1.msra.mxu0 0.0
    %497 = vmatprep.subr.mxu0 0.0
    %498 = vmatpush1.msra.mxu0 0.0
    %499 = vmatprep.subr.mxu0 0.0
    %500 = vmatpush1.msra.mxu0 0.0
    %501 = vmatprep.subr.mxu0 0.0
    %502 = vmatpush1.msra.mxu0 0.0
    %503 = vmatprep.subr.mxu0 0.0
    %504 = vmatpush1.msra.mxu0 0.0
    %505 = vmatprep.subr.mxu0 0.0
    %506 = vmatpush1.msra.mxu0 0.0
    %507 = vmatprep.subr.mxu0 0.0
    %508 = vmatpush1.msra.mxu0 0.0
    %509 = vmatprep.subr.mxu0 0.0
    %510 = vmatpush1.msra.mxu0 0.0
    %511 = vmatprep.subr.mxu0 0.0
    %512 = vmatpush1.msra.mxu0 0.0
    %513 = vmatprep.subr.mxu0 0.0
    %514 = vmatpush1.msra.mxu0 0.0
    %515 = vmatprep.subr.mxu0 0.0
    %516 = vmatpush1.msra.mxu0 0.0
    %517 = vmatprep.subr.mxu0 0.0
    %518 = vmatpush1.msra.mxu0 0.0
    %519 = vmatprep.subr.mxu0 0.0
    %520 = vmatpush1.msra.mxu0 0.0
    %521 = vmatprep.subr.mxu0 0.0
    %522 = vmatpush1.msra.mxu0 0.0
    %523 = vmatprep.subr.mxu0 0.0
    %524 = vmatpush1.msra.mxu0 0.0
    %525 = vmatprep.subr.mxu0 0.0
    %526 = vmatpush1.msra.mxu0 0.0
    %527 = vmatprep.subr.mxu0 0.0
    %528 = vmatpush1.msra.mxu0 0.0
    %529 = vmatprep.subr.mxu0 0.0
    %530 = vmatpush1.msra.mxu0 0.0
    %531 = vmatprep.subr.mxu0 0.0
    %532 = vmatpush1.msra.mxu0 0.0
    %533 = vmatprep.subr.mxu0 0.0
    %534 = vmatpush1.msra.mxu0 0.0
    %535 = vmatprep.mubr.f32.mxu0 0.0
    %536 = vmatmul.mubr.f32.gmra.mrb[0].mxu0 %v469
    %v537 = vpop.f32.mrb[0].mxu0
    %v538 = vadd.f32 %v140, %v537
    %v539 = vpop.f32.mrb[0].mxu0
    %540 = vdwg.mxu0
    %v541 = vtanh.pop %v538
    %542 = vst.msk [vmem:[#allocation2 + $0x8] sm:$0x3] %vm217, %v541
    %544 = vrot.lane.b32.xlu0 %v541, 64
    %v545 = vpop.permute.xlu0 %544
    %547 = vst.msk [vmem:[#allocation2 + $0x6] sm:$0x3] %vm223, %v545
    %v549 = vrot.slane %v140, 2
    %v551 = vsel %vm61, %v541, 0
    %553 = vmatprep.subr.mxu0 0.0
    %554 = vmatpush1.msra.mxu0 %v46
    %555 = vmatprep.subr.mxu0 0.0
    %556 = vmatpush1.msra.mxu0 %v47
    %557 = vmatprep.subr.mxu0 0.0
    %558 = vmatpush1.msra.mxu0 %v48
    %559 = vmatprep.subr.mxu0 0.0
    %560 = vmatpush1.msra.mxu0 %v49
    %561 = vmatprep.subr.mxu0 0.0
    %562 = vmatpush1.msra.mxu0 %v50
    %563 = vmatprep.subr.mxu0 0.0
    %564 = vmatpush1.msra.mxu0 %v51
    %565 = vmatprep.subr.mxu0 0.0
    %566 = vmatpush1.msra.mxu0 %v52
    %567 = vmatprep.subr.mxu0 0.0
    %568 = vmatpush1.msra.mxu0 %v53
    %569 = vmatprep.subr.mxu0 0.0
    %570 = vmatpush1.msra.mxu0 0.0
    %571 = vmatprep.subr.mxu0 0.0
    %572 = vmatpush1.msra.mxu0 0.0
    %573 = vmatprep.subr.mxu0 0.0
    %574 = vmatpush1.msra.mxu0 0.0
    %575 = vmatprep.subr.mxu0 0.0
    %576 = vmatpush1.msra.mxu0 0.0
    %577 = vmatprep.subr.mxu0 0.0
    %578 = vmatpush1.msra.mxu0 0.0
    %579 = vmatprep.subr.mxu0 0.0
    %580 = vmatpush1.msra.mxu0 0.0
    %581 = vmatprep.subr.mxu0 0.0
    %582 = vmatpush1.msra.mxu0 0.0
    %583 = vmatprep.subr.mxu0 0.0
    %584 = vmatpush1.msra.mxu0 0.0
    %585 = vmatprep.subr.mxu0 0.0
    %586 = vmatpush1.msra.mxu0 0.0
    %587 = vmatprep.subr.mxu0 0.0
    %588 = vmatpush1.msra.mxu0 0.0
    %589 = vmatprep.subr.mxu0 0.0
    %590 = vmatpush1.msra.mxu0 0.0
    %591 = vmatprep.subr.mxu0 0.0
    %592 = vmatpush1.msra.mxu0 0.0
    %593 = vmatprep.subr.mxu0 0.0
    %594 = vmatpush1.msra.mxu0 0.0
    %595 = vmatprep.subr.mxu0 0.0
    %596 = vmatpush1.msra.mxu0 0.0
    %597 = vmatprep.subr.mxu0 0.0
    %598 = vmatpush1.msra.mxu0 0.0
    %599 = vmatprep.subr.mxu0 0.0
    %600 = vmatpush1.msra.mxu0 0.0
    %601 = vmatprep.subr.mxu0 0.0
    %602 = vmatpush1.msra.mxu0 0.0
    %603 = vmatprep.subr.mxu0 0.0
    %604 = vmatpush1.msra.mxu0 0.0
    %605 = vmatprep.subr.mxu0 0.0
    %606 = vmatpush1.msra.mxu0 0.0
    %607 = vmatprep.subr.mxu0 0.0
    %608 = vmatpush1.msra.mxu0 0.0
    %609 = vmatprep.subr.mxu0 0.0
    %610 = vmatpush1.msra.mxu0 0.0
    %611 = vmatprep.subr.mxu0 0.0
    %612 = vmatpush1.msra.mxu0 0.0
    %613 = vmatprep.subr.mxu0 0.0
    %614 = vmatpush1.msra.mxu0 0.0
    %615 = vmatprep.subr.mxu0 0.0
    %616 = vmatpush1.msra.mxu0 0.0
    %617 = vmatprep.mubr.f32.mxu0 0.0
    %618 = vmatmul.mubr.f32.gmra.mrb[0].mxu0 %v551
    %v619 = vpop.f32.mrb[0].mxu0
    %v620 = vadd.f32 %v549, %v619
    %v621 = vpop.f32.mrb[0].mxu0
    %622 = vdwg.mxu0
    %v623 = vtanh.pop %v620
    %624 = vst.msk [vmem:[#allocation2 + $0xa] sm:$0x3] %vm217, %v623
    %626 = vrot.lane.b32.xlu0 %v623, 64
    %v627 = vpop.permute.xlu0 %626
    %629 = vst.msk [vmem:[#allocation2 + $0x4] sm:$0x3] %vm223, %v627
    %v630 = vrot.slane %v140, 4
    %v632 = vsel %vm61, %v623, 0
    %634 = vmatprep.subr.mxu0 0.0
    %635 = vmatpush1.msra.mxu0 %v46
    %636 = vmatprep.subr.mxu0 0.0
    %637 = vmatpush1.msra.mxu0 %v47
    %638 = vmatprep.subr.mxu0 0.0
    %639 = vmatpush1.msra.mxu0 %v48
    %640 = vmatprep.subr.mxu0 0.0
    %641 = vmatpush1.msra.mxu0 %v49
    %642 = vmatprep.subr.mxu0 0.0
    %643 = vmatpush1.msra.mxu0 %v50
    %644 = vmatprep.subr.mxu0 0.0
    %645 = vmatpush1.msra.mxu0 %v51
    %646 = vmatprep.subr.mxu0 0.0
    %647 = vmatpush1.msra.mxu0 %v52
    %648 = vmatprep.subr.mxu0 0.0
    %649 = vmatpush1.msra.mxu0 %v53
    %650 = vmatprep.subr.mxu0 0.0
    %651 = vmatpush1.msra.mxu0 0.0
    %652 = vmatprep.subr.mxu0 0.0
    %653 = vmatpush1.msra.mxu0 0.0
    %654 = vmatprep.subr.mxu0 0.0
    %655 = vmatpush1.msra.mxu0 0.0
    %656 = vmatprep.subr.mxu0 0.0
    %657 = vmatpush1.msra.mxu0 0.0
    %658 = vmatprep.subr.mxu0 0.0
    %659 = vmatpush1.msra.mxu0 0.0
    %660 = vmatprep.subr.mxu0 0.0
    %661 = vmatpush1.msra.mxu0 0.0
    %662 = vmatprep.subr.mxu0 0.0
    %663 = vmatpush1.msra.mxu0 0.0
    %664 = vmatprep.subr.mxu0 0.0
    %665 = vmatpush1.msra.mxu0 0.0
    %666 = vmatprep.subr.mxu0 0.0
    %667 = vmatpush1.msra.mxu0 0.0
    %668 = vmatprep.subr.mxu0 0.0
    %669 = vmatpush1.msra.mxu0 0.0
    %670 = vmatprep.subr.mxu0 0.0
    %671 = vmatpush1.msra.mxu0 0.0
    %672 = vmatprep.subr.mxu0 0.0
    %673 = vmatpush1.msra.mxu0 0.0
    %674 = vmatprep.subr.mxu0 0.0
    %675 = vmatpush1.msra.mxu0 0.0
    %676 = vmatprep.subr.mxu0 0.0
    %677 = vmatpush1.msra.mxu0 0.0
    %678 = vmatprep.subr.mxu0 0.0
    %679 = vmatpush1.msra.mxu0 0.0
    %680 = vmatprep.subr.mxu0 0.0
    %681 = vmatpush1.msra.mxu0 0.0
    %682 = vmatprep.subr.mxu0 0.0
    %683 = vmatpush1.msra.mxu0 0.0
    %684 = vmatprep.subr.mxu0 0.0
    %685 = vmatpush1.msra.mxu0 0.0
    %686 = vmatprep.subr.mxu0 0.0
    %687 = vmatpush1.msra.mxu0 0.0
    %688 = vmatprep.subr.mxu0 0.0
    %689 = vmatpush1.msra.mxu0 0.0
    %690 = vmatprep.subr.mxu0 0.0
    %691 = vmatpush1.msra.mxu0 0.0
    %692 = vmatprep.subr.mxu0 0.0
    %693 = vmatpush1.msra.mxu0 0.0
    %694 = vmatprep.subr.mxu0 0.0
    %695 = vmatpush1.msra.mxu0 0.0
    %696 = vmatprep.subr.mxu0 0.0
    %697 = vmatpush1.msra.mxu0 0.0
    %698 = vmatprep.mubr.f32.mxu0 0.0
    %699 = vmatmul.mubr.f32.gmra.mrb[0].mxu0 %v632
    %v700 = vpop.f32.mrb[0].mxu0
    %v701 = vadd.f32 %v630, %v700
    %v702 = vpop.f32.mrb[0].mxu0
    %703 = vdwg.mxu0
    %v704 = vtanh.pop %v701
    %705 = vst.msk [vmem:[#allocation2 + $0xc] sm:$0x3] %vm217, %v704
    %707 = vrot.lane.b32.xlu0 %v704, 64
    %v708 = vpop.permute.xlu0 %707
    %710 = vst.msk [vmem:[#allocation2 + $0x2] sm:$0x3] %vm223, %v708
    %v711 = vrot.slane %v140, 6
    %v713 = vsel %vm61, %v704, 0
    %715 = vmatprep.subr.mxu0 0.0
    %716 = vmatpush1.msra.mxu0 %v46
    %717 = vmatprep.subr.mxu0 0.0
    %718 = vmatpush1.msra.mxu0 %v47
    %719 = vmatprep.subr.mxu0 0.0
    %720 = vmatpush1.msra.mxu0 %v48
    %721 = vmatprep.subr.mxu0 0.0
    %722 = vmatpush1.msra.mxu0 %v49
    %723 = vmatprep.subr.mxu0 0.0
    %724 = vmatpush1.msra.mxu0 %v50
    %725 = vmatprep.subr.mxu0 0.0
    %726 = vmatpush1.msra.mxu0 %v51
    %727 = vmatprep.subr.mxu0 0.0
    %728 = vmatpush1.msra.mxu0 %v52
    %729 = vmatprep.subr.mxu0 0.0
    %730 = vmatpush1.msra.mxu0 %v53
    %731 = vmatprep.subr.mxu0 0.0
    %732 = vmatpush1.msra.mxu0 0.0
    %733 = vmatprep.subr.mxu0 0.0
    %734 = vmatpush1.msra.mxu0 0.0
    %735 = vmatprep.subr.mxu0 0.0
    %736 = vmatpush1.msra.mxu0 0.0
    %737 = vmatprep.subr.mxu0 0.0
    %738 = vmatpush1.msra.mxu0 0.0
    %739 = vmatprep.subr.mxu0 0.0
    %740 = vmatpush1.msra.mxu0 0.0
    %741 = vmatprep.subr.mxu0 0.0
    %742 = vmatpush1.msra.mxu0 0.0
    %743 = vmatprep.subr.mxu0 0.0
    %744 = vmatpush1.msra.mxu0 0.0
    %745 = vmatprep.subr.mxu0 0.0
    %746 = vmatpush1.msra.mxu0 0.0
    %747 = vmatprep.subr.mxu0 0.0
    %748 = vmatpush1.msra.mxu0 0.0
    %749 = vmatprep.subr.mxu0 0.0
    %750 = vmatpush1.msra.mxu0 0.0
    %751 = vmatprep.subr.mxu0 0.0
    %752 = vmatpush1.msra.mxu0 0.0
    %753 = vmatprep.subr.mxu0 0.0
    %754 = vmatpush1.msra.mxu0 0.0
    %755 = vmatprep.subr.mxu0 0.0
    %756 = vmatpush1.msra.mxu0 0.0
    %757 = vmatprep.subr.mxu0 0.0
    %758 = vmatpush1.msra.mxu0 0.0
    %759 = vmatprep.subr.mxu0 0.0
    %760 = vmatpush1.msra.mxu0 0.0
    %761 = vmatprep.subr.mxu0 0.0
    %762 = vmatpush1.msra.mxu0 0.0
    %763 = vmatprep.subr.mxu0 0.0
    %764 = vmatpush1.msra.mxu0 0.0
    %765 = vmatprep.subr.mxu0 0.0
    %766 = vmatpush1.msra.mxu0 0.0
    %767 = vmatprep.subr.mxu0 0.0
    %768 = vmatpush1.msra.mxu0 0.0
    %769 = vmatprep.subr.mxu0 0.0
    %770 = vmatpush1.msra.mxu0 0.0
    %771 = vmatprep.subr.mxu0 0.0
    %772 = vmatpush1.msra.mxu0 0.0
    %773 = vmatprep.subr.mxu0 0.0
    %774 = vmatpush1.msra.mxu0 0.0
    %775 = vmatprep.subr.mxu0 0.0
    %776 = vmatpush1.msra.mxu0 0.0
    %777 = vmatprep.subr.mxu0 0.0
    %778 = vmatpush1.msra.mxu0 0.0
    %779 = vmatprep.mubr.f32.mxu0 0.0
    %780 = vmatmul.mubr.f32.gmra.mrb[0].mxu0 %v713
    %v781 = vpop.f32.mrb[0].mxu0
    %v782 = vadd.f32 %v711, %v781
    %v783 = vpop.f32.mrb[0].mxu0
    %784 = vdwg.mxu0
    %v785 = vtanh.pop %v782
    %786 = vst.msk [vmem:[#allocation2 + $0xe] sm:$0x3] %vm217, %v785
    %788 = vrot.lane.b32.xlu0 %v785, 64
    %v789 = vpop.permute.xlu0 %788
    %791 = vst.msk [vmem:[#allocation2] sm:$0x3] %vm223, %v789
    %v792 = vld [vmem:[#allocation2] sm:$0xff]
    %v793 = vld [vmem:[#allocation2 + $0x8] sm:$0xff]
    %v794 = vld [vmem:[%s4] sm:$0xff]
    %v795 = vld [vmem:[%s4 + $0x8] sm:$0xff]
    %v796 = vld [vmem:[%s4 + $0x10] sm:$0xff]
    %v797 = vld [vmem:[%s4 + $0x18] sm:$0xff]
    %v798 = vld [vmem:[%s4 + $0x20] sm:$0xff]
    %v799 = vld [vmem:[%s4 + $0x28] sm:$0xff]
    %v800 = vld [vmem:[%s4 + $0x30] sm:$0xff]
    %v801 = vld [vmem:[%s4 + $0x38] sm:$0xff]
    %v802 = vld [vmem:[%s4 + $0x40] sm:$0xff]
    %v803 = vld [vmem:[%s4 + $0x48] sm:$0xff]
    %v804 = vld [vmem:[%s4 + $0x50] sm:$0xff]
    %v805 = vld [vmem:[%s4 + $0x58] sm:$0xff]
    %v806 = vld [vmem:[%s4 + $0x60] sm:$0xff]
    %v807 = vld [vmem:[%s4 + $0x68] sm:$0xff]
    %v808 = vld [vmem:[%s4 + $0x70] sm:$0xff]
    %v809 = vld [vmem:[%s4 + $0x78] sm:$0xff]
    %v810 = vld [vmem:[%s5] sm:$0xff]
    %v811 = vld [vmem:[%s5 + $0x8] sm:$0xff]
    %v812 = vld [vmem:[%s5 + $0x10] sm:$0xff]
    %v813 = vld [vmem:[%s5 + $0x18] sm:$0xff]
    %v814 = vld [vmem:[%s5 + $0x20] sm:$0xff]
    %v815 = vld [vmem:[%s5 + $0x28] sm:$0xff]
    %v816 = vld [vmem:[%s5 + $0x30] sm:$0xff]
    %v817 = vld [vmem:[%s5 + $0x38] sm:$0xff]
    %v818 = vld [vmem:[%s6] sm:$0x1]
    %v820 = vlaneseq
    %v821 = vshrl.u32 %v820, 7
    %v822 = vsub.s32 0, %v821
    %v823 = vrot.slane %v818, %v822
    %825 = vmatprep.subr.mxu0 0.0
    %826 = vmatpush1.msra.mxu0 %v794
    %827 = vmatprep.subr.mxu0 0.0
    %828 = vmatpush1.msra.mxu0 %v795
    %829 = vmatprep.subr.mxu0 0.0
    %830 = vmatpush1.msra.mxu0 %v796
    %831 = vmatprep.subr.mxu0 0.0
    %832 = vmatpush1.msra.mxu0 %v797
    %833 = vmatprep.subr.mxu0 0.0
    %834 = vmatpush1.msra.mxu0 %v798
    %835 = vmatprep.subr.mxu0 0.0
    %836 = vmatpush1.msra.mxu0 %v799
    %837 = vmatprep.subr.mxu0 0.0
    %838 = vmatpush1.msra.mxu0 %v800
    %839 = vmatprep.subr.mxu0 0.0
    %840 = vmatpush1.msra.mxu0 %v801
    %841 = vmatprep.subr.mxu0 0.0
    %842 = vmatpush1.msra.mxu0 %v802
    %843 = vmatprep.subr.mxu0 0.0
    %844 = vmatpush1.msra.mxu0 %v803
    %845 = vmatprep.subr.mxu0 0.0
    %846 = vmatpush1.msra.mxu0 %v804
    %847 = vmatprep.subr.mxu0 0.0
    %848 = vmatpush1.msra.mxu0 %v805
    %849 = vmatprep.subr.mxu0 0.0
    %850 = vmatpush1.msra.mxu0 %v806
    %851 = vmatprep.subr.mxu0 0.0
    %852 = vmatpush1.msra.mxu0 %v807
    %853 = vmatprep.subr.mxu0 0.0
    %854 = vmatpush1.msra.mxu0 %v808
    %855 = vmatprep.subr.mxu0 0.0
    %856 = vmatpush1.msra.mxu0 %v809
    %857 = vmatprep.subr.mxu0 0.0
    %858 = vmatpush1.msra.mxu0 0.0
    %859 = vmatprep.subr.mxu0 0.0
    %860 = vmatpush1.msra.mxu0 0.0
    %861 = vmatprep.subr.mxu0 0.0
    %862 = vmatpush1.msra.mxu0 0.0
    %863 = vmatprep.subr.mxu0 0.0
    %864 = vmatpush1.msra.mxu0 0.0
    %865 = vmatprep.subr.mxu0 0.0
    %866 = vmatpush1.msra.mxu0 0.0
    %867 = vmatprep.subr.mxu0 0.0
    %868 = vmatpush1.msra.mxu0 0.0
    %869 = vmatprep.subr.mxu0 0.0
    %870 = vmatpush1.msra.mxu0 0.0
    %871 = vmatprep.subr.mxu0 0.0
    %872 = vmatpush1.msra.mxu0 0.0
    %873 = vmatprep.subr.mxu0 0.0
    %874 = vmatpush1.msra.mxu0 0.0
    %875 = vmatprep.subr.mxu0 0.0
    %876 = vmatpush1.msra.mxu0 0.0
    %877 = vmatprep.subr.mxu0 0.0
    %878 = vmatpush1.msra.mxu0 0.0
    %879 = vmatprep.subr.mxu0 0.0
    %880 = vmatpush1.msra.mxu0 0.0
    %881 = vmatprep.subr.mxu0 0.0
    %882 = vmatpush1.msra.mxu0 0.0
    %883 = vmatprep.subr.mxu0 0.0
    %884 = vmatpush1.msra.mxu0 0.0
    %885 = vmatprep.subr.mxu0 0.0
    %886 = vmatpush1.msra.mxu0 0.0
    %887 = vmatprep.subr.mxu0 0.0
    %888 = vmatpush1.msra.mxu0 0.0
    %889 = vmatprep.mubr.f32.mxu0 0.0
    %890 = vmatmul.mubr.f32.gmra.mrb[0].mxu0 %v792
    %v891 = vpop.f32.mrb[0].mxu0
    %v892 = vadd.f32 %v823, %v891
    %v893 = vpop.f32.mrb[0].mxu0
    %894 = vmatprep.mubr.f32.mxu0 0.0
    %895 = vmatmul.mubr.f32.gmra.mrb[0].mxu0 %v793
    %v896 = vpop.f32.mrb[0].mxu0
    %v897 = vadd.f32 %v823, %v896
    %v898 = vpop.f32.mrb[0].mxu0
    %899 = vdwg.mxu0
    %900 = vmatprep.subr.mxu0 0.0
    %901 = vmatpush1.msra.mxu0 %v810
    %902 = vmatprep.subr.mxu0 0.0
    %903 = vmatpush1.msra.mxu0 %v811
    %904 = vmatprep.subr.mxu0 0.0
    %905 = vmatpush1.msra.mxu0 %v812
    %906 = vmatprep.subr.mxu0 0.0
    %907 = vmatpush1.msra.mxu0 %v813
    %908 = vmatprep.subr.mxu0 0.0
    %909 = vmatpush1.msra.mxu0 %v814
    %910 = vmatprep.subr.mxu0 0.0
    %911 = vmatpush1.msra.mxu0 %v815
    %912 = vmatprep.subr.mxu0 0.0
    %913 = vmatpush1.msra.mxu0 %v816
    %914 = vmatprep.subr.mxu0 0.0
    %915 = vmatpush1.msra.mxu0 %v817
    %916 = vmatprep.subr.mxu0 0.0
    %917 = vmatpush1.msra.mxu0 0.0
    %918 = vmatprep.subr.mxu0 0.0
    %919 = vmatpush1.msra.mxu0 0.0
    %920 = vmatprep.subr.mxu0 0.0
    %921 = vmatpush1.msra.mxu0 0.0
    %922 = vmatprep.subr.mxu0 0.0
    %923 = vmatpush1.msra.mxu0 0.0
    %924 = vmatprep.subr.mxu0 0.0
    %925 = vmatpush1.msra.mxu0 0.0
    %926 = vmatprep.subr.mxu0 0.0
    %927 = vmatpush1.msra.mxu0 0.0
    %928 = vmatprep.subr.mxu0 0.0
    %929 = vmatpush1.msra.mxu0 0.0
    %930 = vmatprep.subr.mxu0 0.0
    %931 = vmatpush1.msra.mxu0 0.0
    %932 = vmatprep.subr.mxu0 0.0
    %933 = vmatpush1.msra.mxu0 0.0
    %934 = vmatprep.subr.mxu0 0.0
    %935 = vmatpush1.msra.mxu0 0.0
    %936 = vmatprep.subr.mxu0 0.0
    %937 = vmatpush1.msra.mxu0 0.0
    %938 = vmatprep.subr.mxu0 0.0
    %939 = vmatpush1.msra.mxu0 0.0
    %940 = vmatprep.subr.mxu0 0.0
    %941 = vmatpush1.msra.mxu0 0.0
    %942 = vmatprep.subr.mxu0 0.0
    %943 = vmatpush1.msra.mxu0 0.0
    %944 = vmatprep.subr.mxu0 0.0
    %945 = vmatpush1.msra.mxu0 0.0
    %946 = vmatprep.subr.mxu0 0.0
    %947 = vmatpush1.msra.mxu0 0.0
    %948 = vmatprep.subr.mxu0 0.0
    %949 = vmatpush1.msra.mxu0 0.0
    %950 = vmatprep.subr.mxu0 0.0
    %951 = vmatpush1.msra.mxu0 0.0
    %952 = vmatprep.subr.mxu0 0.0
    %953 = vmatpush1.msra.mxu0 0.0
    %954 = vmatprep.subr.mxu0 0.0
    %955 = vmatpush1.msra.mxu0 0.0
    %956 = vmatprep.subr.mxu0 0.0
    %957 = vmatpush1.msra.mxu0 0.0
    %958 = vmatprep.subr.mxu0 0.0
    %959 = vmatpush1.msra.mxu0 0.0
    %960 = vmatprep.subr.mxu0 0.0
    %961 = vmatpush1.msra.mxu0 0.0
    %962 = vmatprep.subr.mxu0 0.0
    %963 = vmatpush1.msra.mxu0 0.0
    %964 = vmatprep.mubr.f32.mxu0 0.0
    %965 = vmatmul.mubr.f32.gmra.mrb[0].mxu0 %v144
    %v966 = vpop.f32.mrb[0].mxu0
    %v967 = vadd.f32 %v892, %v966
    %v968 = vpop.f32.mrb[0].mxu0
    %969 = vdwg.mxu0
    %v970 = vtanh.pop %v967
    %971 = vst.msk [vmem:[#allocation3] sm:$0x3] %vm217, %v970
    %973 = vrot.lane.b32.xlu0 %v970, 64
    %v974 = vpop.permute.xlu0 %973
    %976 = vst.msk [vmem:[#allocation3 + $0xe] sm:$0x3] %vm223, %v974
    %v978 = vrot.slane %v892, 2
    %v980 = vsel %vm61, %v970, 0
    %982 = vmatprep.subr.mxu0 0.0
    %983 = vmatpush1.msra.mxu0 %v810
    %984 = vmatprep.subr.mxu0 0.0
    %985 = vmatpush1.msra.mxu0 %v811
    %986 = vmatprep.subr.mxu0 0.0
    %987 = vmatpush1.msra.mxu0 %v812
    %988 = vmatprep.subr.mxu0 0.0
    %989 = vmatpush1.msra.mxu0 %v813
    %990 = vmatprep.subr.mxu0 0.0
    %991 = vmatpush1.msra.mxu0 %v814
    %992 = vmatprep.subr.mxu0 0.0
    %993 = vmatpush1.msra.mxu0 %v815
    %994 = vmatprep.subr.mxu0 0.0
    %995 = vmatpush1.msra.mxu0 %v816
    %996 = vmatprep.subr.mxu0 0.0
    %997 = vmatpush1.msra.mxu0 %v817
    %998 = vmatprep.subr.mxu0 0.0
    %999 = vmatpush1.msra.mxu0 0.0
    %1000 = vmatprep.subr.mxu0 0.0
    %1001 = vmatpush1.msra.mxu0 0.0
    %1002 = vmatprep.subr.mxu0 0.0
    %1003 = vmatpush1.msra.mxu0 0.0
    %1004 = vmatprep.subr.mxu0 0.0
    %1005 = vmatpush1.msra.mxu0 0.0
    %1006 = vmatprep.subr.mxu0 0.0
    %1007 = vmatpush1.msra.mxu0 0.0
    %1008 = vmatprep.subr.mxu0 0.0
    %1009 = vmatpush1.msra.mxu0 0.0
    %1010 = vmatprep.subr.mxu0 0.0
    %1011 = vmatpush1.msra.mxu0 0.0
    %1012 = vmatprep.subr.mxu0 0.0
    %1013 = vmatpush1.msra.mxu0 0.0
    %1014 = vmatprep.subr.mxu0 0.0
    %1015 = vmatpush1.msra.mxu0 0.0
    %1016 = vmatprep.subr.mxu0 0.0
    %1017 = vmatpush1.msra.mxu0 0.0
    %1018 = vmatprep.subr.mxu0 0.0
    %1019 = vmatpush1.msra.mxu0 0.0
    %1020 = vmatprep.subr.mxu0 0.0
    %1021 = vmatpush1.msra.mxu0 0.0
    %1022 = vmatprep.subr.mxu0 0.0
    %1023 = vmatpush1.msra.mxu0 0.0
    %1024 = vmatprep.subr.mxu0 0.0
    %1025 = vmatpush1.msra.mxu0 0.0
    %1026 = vmatprep.subr.mxu0 0.0
    %1027 = vmatpush1.msra.mxu0 0.0
    %1028 = vmatprep.subr.mxu0 0.0
    %1029 = vmatpush1.msra.mxu0 0.0
    %1030 = vmatprep.subr.mxu0 0.0
    %1031 = vmatpush1.msra.mxu0 0.0
    %1032 = vmatprep.subr.mxu0 0.0
    %1033 = vmatpush1.msra.mxu0 0.0
    %1034 = vmatprep.subr.mxu0 0.0
    %1035 = vmatpush1.msra.mxu0 0.0
    %1036 = vmatprep.subr.mxu0 0.0
    %1037 = vmatpush1.msra.mxu0 0.0
    %1038 = vmatprep.subr.mxu0 0.0
    %1039 = vmatpush1.msra.mxu0 0.0
    %1040 = vmatprep.subr.mxu0 0.0
    %1041 = vmatpush1.msra.mxu0 0.0
    %1042 = vmatprep.subr.mxu0 0.0
    %1043 = vmatpush1.msra.mxu0 0.0
    %1044 = vmatprep.subr.mxu0 0.0
    %1045 = vmatpush1.msra.mxu0 0.0
    %1046 = vmatprep.mubr.f32.mxu0 0.0
    %1047 = vmatmul.mubr.f32.gmra.mrb[0].mxu0 %v980
    %v1048 = vpop.f32.mrb[0].mxu0
    %v1049 = vadd.f32 %v978, %v1048
    %v1050 = vpop.f32.mrb[0].mxu0
    %1051 = vdwg.mxu0
    %v1052 = vtanh.pop %v1049
    %1053 = vst.msk [vmem:[#allocation3 + $0x2] sm:$0x3] %vm217, %v1052
    %1055 = vrot.lane.b32.xlu0 %v1052, 64
    %v1056 = vpop.permute.xlu0 %1055
    %1058 = vst.msk [vmem:[#allocation3 + $0xc] sm:$0x3] %vm223, %v1056
    %v1059 = vrot.slane %v892, 4
    %v1061 = vsel %vm61, %v1052, 0
    %1063 = vmatprep.subr.mxu0 0.0
    %1064 = vmatpush1.msra.mxu0 %v810
    %1065 = vmatprep.subr.mxu0 0.0
    %1066 = vmatpush1.msra.mxu0 %v811
    %1067 = vmatprep.subr.mxu0 0.0
    %1068 = vmatpush1.msra.mxu0 %v812
    %1069 = vmatprep.subr.mxu0 0.0
    %1070 = vmatpush1.msra.mxu0 %v813
    %1071 = vmatprep.subr.mxu0 0.0
    %1072 = vmatpush1.msra.mxu0 %v814
    %1073 = vmatprep.subr.mxu0 0.0
    %1074 = vmatpush1.msra.mxu0 %v815
    %1075 = vmatprep.subr.mxu0 0.0
    %1076 = vmatpush1.msra.mxu0 %v816
    %1077 = vmatprep.subr.mxu0 0.0
    %1078 = vmatpush1.msra.mxu0 %v817
    %1079 = vmatprep.subr.mxu0 0.0
    %1080 = vmatpush1.msra.mxu0 0.0
    %1081 = vmatprep.subr.mxu0 0.0
    %1082 = vmatpush1.msra.mxu0 0.0
    %1083 = vmatprep.subr.mxu0 0.0
    %1084 = vmatpush1.msra.mxu0 0.0
    %1085 = vmatprep.subr.mxu0 0.0
    %1086 = vmatpush1.msra.mxu0 0.0
    %1087 = vmatprep.subr.mxu0 0.0
    %1088 = vmatpush1.msra.mxu0 0.0
    %1089 = vmatprep.subr.mxu0 0.0
    %1090 = vmatpush1.msra.mxu0 0.0
    %1091 = vmatprep.subr.mxu0 0.0
    %1092 = vmatpush1.msra.mxu0 0.0
    %1093 = vmatprep.subr.mxu0 0.0
    %1094 = vmatpush1.msra.mxu0 0.0
    %1095 = vmatprep.subr.mxu0 0.0
    %1096 = vmatpush1.msra.mxu0 0.0
    %1097 = vmatprep.subr.mxu0 0.0
    %1098 = vmatpush1.msra.mxu0 0.0
    %1099 = vmatprep.subr.mxu0 0.0
    %1100 = vmatpush1.msra.mxu0 0.0
    %1101 = vmatprep.subr.mxu0 0.0
    %1102 = vmatpush1.msra.mxu0 0.0
    %1103 = vmatprep.subr.mxu0 0.0
    %1104 = vmatpush1.msra.mxu0 0.0
    %1105 = vmatprep.subr.mxu0 0.0
    %1106 = vmatpush1.msra.mxu0 0.0
    %1107 = vmatprep.subr.mxu0 0.0
    %1108 = vmatpush1.msra.mxu0 0.0
    %1109 = vmatprep.subr.mxu0 0.0
    %1110 = vmatpush1.msra.mxu0 0.0
    %1111 = vmatprep.subr.mxu0 0.0
    %1112 = vmatpush1.msra.mxu0 0.0
    %1113 = vmatprep.subr.mxu0 0.0
    %1114 = vmatpush1.msra.mxu0 0.0
    %1115 = vmatprep.subr.mxu0 0.0
    %1116 = vmatpush1.msra.mxu0 0.0
    %1117 = vmatprep.subr.mxu0 0.0
    %1118 = vmatpush1.msra.mxu0 0.0
    %1119 = vmatprep.subr.mxu0 0.0
    %1120 = vmatpush1.msra.mxu0 0.0
    %1121 = vmatprep.subr.mxu0 0.0
    %1122 = vmatpush1.msra.mxu0 0.0
    %1123 = vmatprep.subr.mxu0 0.0
    %1124 = vmatpush1.msra.mxu0 0.0
    %1125 = vmatprep.subr.mxu0 0.0
    %1126 = vmatpush1.msra.mxu0 0.0
    %1127 = vmatprep.mubr.f32.mxu0 0.0
    %1128 = vmatmul.mubr.f32.gmra.mrb[0].mxu0 %v1061
    %v1129 = vpop.f32.mrb[0].mxu0
    %v1130 = vadd.f32 %v1059, %v1129
    %v1131 = vpop.f32.mrb[0].mxu0
    %1132 = vdwg.mxu0
    %v1133 = vtanh.pop %v1130
    %1134 = vst.msk [vmem:[#allocation3 + $0x4] sm:$0x3] %vm217, %v1133
    %1136 = vrot.lane.b32.xlu0 %v1133, 64
    %v1137 = vpop.permute.xlu0 %1136
    %1139 = vst.msk [vmem:[#allocation3 + $0xa] sm:$0x3] %vm223, %v1137
    %v1140 = vrot.slane %v892, 6
    %v1142 = vsel %vm61, %v1133, 0
    %1144 = vmatprep.subr.mxu0 0.0
    %1145 = vmatpush1.msra.mxu0 %v810
    %1146 = vmatprep.subr.mxu0 0.0
    %1147 = vmatpush1.msra.mxu0 %v811
    %1148 = vmatprep.subr.mxu0 0.0
    %1149 = vmatpush1.msra.mxu0 %v812
    %1150 = vmatprep.subr.mxu0 0.0
    %1151 = vmatpush1.msra.mxu0 %v813
    %1152 = vmatprep.subr.mxu0 0.0
    %1153 = vmatpush1.msra.mxu0 %v814
    %1154 = vmatprep.subr.mxu0 0.0
    %1155 = vmatpush1.msra.mxu0 %v815
    %1156 = vmatprep.subr.mxu0 0.0
    %1157 = vmatpush1.msra.mxu0 %v816
    %1158 = vmatprep.subr.mxu0 0.0
    %1159 = vmatpush1.msra.mxu0 %v817
    %1160 = vmatprep.subr.mxu0 0.0
    %1161 = vmatpush1.msra.mxu0 0.0
    %1162 = vmatprep.subr.mxu0 0.0
    %1163 = vmatpush1.msra.mxu0 0.0
    %1164 = vmatprep.subr.mxu0 0.0
    %1165 = vmatpush1.msra.mxu0 0.0
    %1166 = vmatprep.subr.mxu0 0.0
    %1167 = vmatpush1.msra.mxu0 0.0
    %1168 = vmatprep.subr.mxu0 0.0
    %1169 = vmatpush1.msra.mxu0 0.0
    %1170 = vmatprep.subr.mxu0 0.0
    %1171 = vmatpush1.msra.mxu0 0.0
    %1172 = vmatprep.subr.mxu0 0.0
    %1173 = vmatpush1.msra.mxu0 0.0
    %1174 = vmatprep.subr.mxu0 0.0
    %1175 = vmatpush1.msra.mxu0 0.0
    %1176 = vmatprep.subr.mxu0 0.0
    %1177 = vmatpush1.msra.mxu0 0.0
    %1178 = vmatprep.subr.mxu0 0.0
    %1179 = vmatpush1.msra.mxu0 0.0
    %1180 = vmatprep.subr.mxu0 0.0
    %1181 = vmatpush1.msra.mxu0 0.0
    %1182 = vmatprep.subr.mxu0 0.0
    %1183 = vmatpush1.msra.mxu0 0.0
    %1184 = vmatprep.subr.mxu0 0.0
    %1185 = vmatpush1.msra.mxu0 0.0
    %1186 = vmatprep.subr.mxu0 0.0
    %1187 = vmatpush1.msra.mxu0 0.0
    %1188 = vmatprep.subr.mxu0 0.0
    %1189 = vmatpush1.msra.mxu0 0.0
    %1190 = vmatprep.subr.mxu0 0.0
    %1191 = vmatpush1.msra.mxu0 0.0
    %1192 = vmatprep.subr.mxu0 0.0
    %1193 = vmatpush1.msra.mxu0 0.0
    %1194 = vmatprep.subr.mxu0 0.0
    %1195 = vmatpush1.msra.mxu0 0.0
    %1196 = vmatprep.subr.mxu0 0.0
    %1197 = vmatpush1.msra.mxu0 0.0
    %1198 = vmatprep.subr.mxu0 0.0
    %1199 = vmatpush1.msra.mxu0 0.0
    %1200 = vmatprep.subr.mxu0 0.0
    %1201 = vmatpush1.msra.mxu0 0.0
    %1202 = vmatprep.subr.mxu0 0.0
    %1203 = vmatpush1.msra.mxu0 0.0
    %1204 = vmatprep.subr.mxu0 0.0
    %1205 = vmatpush1.msra.mxu0 0.0
    %1206 = vmatprep.subr.mxu0 0.0
    %1207 = vmatpush1.msra.mxu0 0.0
    %1208 = vmatprep.mubr.f32.mxu0 0.0
    %1209 = vmatmul.mubr.f32.gmra.mrb[0].mxu0 %v1142
    %v1210 = vpop.f32.mrb[0].mxu0
    %v1211 = vadd.f32 %v1140, %v1210
    %v1212 = vpop.f32.mrb[0].mxu0
    %1213 = vdwg.mxu0
    %v1214 = vtanh.pop %v1211
    %1215 = vst.msk [vmem:[#allocation3 + $0x6] sm:$0x3] %vm217, %v1214
    %1217 = vrot.lane.b32.xlu0 %v1214, 64
    %v1218 = vpop.permute.xlu0 %1217
    %1220 = vst.msk [vmem:[#allocation3 + $0x8] sm:$0x3] %vm223, %v1218
    %v1221 = vsel %vm61, %v1214, 0
    %1223 = vmatprep.subr.mxu0 0.0
    %1224 = vmatpush1.msra.mxu0 %v810
    %1225 = vmatprep.subr.mxu0 0.0
    %1226 = vmatpush1.msra.mxu0 %v811
    %1227 = vmatprep.subr.mxu0 0.0
    %1228 = vmatpush1.msra.mxu0 %v812
    %1229 = vmatprep.subr.mxu0 0.0
    %1230 = vmatpush1.msra.mxu0 %v813
    %1231 = vmatprep.subr.mxu0 0.0
    %1232 = vmatpush1.msra.mxu0 %v814
    %1233 = vmatprep.subr.mxu0 0.0
    %1234 = vmatpush1.msra.mxu0 %v815
    %1235 = vmatprep.subr.mxu0 0.0
    %1236 = vmatpush1.msra.mxu0 %v816
    %1237 = vmatprep.subr.mxu0 0.0
    %1238 = vmatpush1.msra.mxu0 %v817
    %1239 = vmatprep.subr.mxu0 0.0
    %1240 = vmatpush1.msra.mxu0 0.0
    %1241 = vmatprep.subr.mxu0 0.0
    %1242 = vmatpush1.msra.mxu0 0.0
    %1243 = vmatprep.subr.mxu0 0.0
    %1244 = vmatpush1.msra.mxu0 0.0
    %1245 = vmatprep.subr.mxu0 0.0
    %1246 = vmatpush1.msra.mxu0 0.0
    %1247 = vmatprep.subr.mxu0 0.0
    %1248 = vmatpush1.msra.mxu0 0.0
    %1249 = vmatprep.subr.mxu0 0.0
    %1250 = vmatpush1.msra.mxu0 0.0
    %1251 = vmatprep.subr.mxu0 0.0
    %1252 = vmatpush1.msra.mxu0 0.0
    %1253 = vmatprep.subr.mxu0 0.0
    %1254 = vmatpush1.msra.mxu0 0.0
    %1255 = vmatprep.subr.mxu0 0.0
    %1256 = vmatpush1.msra.mxu0 0.0
    %1257 = vmatprep.subr.mxu0 0.0
    %1258 = vmatpush1.msra.mxu0 0.0
    %1259 = vmatprep.subr.mxu0 0.0
    %1260 = vmatpush1.msra.mxu0 0.0
    %1261 = vmatprep.subr.mxu0 0.0
    %1262 = vmatpush1.msra.mxu0 0.0
    %1263 = vmatprep.subr.mxu0 0.0
    %1264 = vmatpush1.msra.mxu0 0.0
    %1265 = vmatprep.subr.mxu0 0.0
    %1266 = vmatpush1.msra.mxu0 0.0
    %1267 = vmatprep.subr.mxu0 0.0
    %1268 = vmatpush1.msra.mxu0 0.0
    %1269 = vmatprep.subr.mxu0 0.0
    %1270 = vmatpush1.msra.mxu0 0.0
    %1271 = vmatprep.subr.mxu0 0.0
    %1272 = vmatpush1.msra.mxu0 0.0
    %1273 = vmatprep.subr.mxu0 0.0
    %1274 = vmatpush1.msra.mxu0 0.0
    %1275 = vmatprep.subr.mxu0 0.0
    %1276 = vmatpush1.msra.mxu0 0.0
    %1277 = vmatprep.subr.mxu0 0.0
    %1278 = vmatpush1.msra.mxu0 0.0
    %1279 = vmatprep.subr.mxu0 0.0
    %1280 = vmatpush1.msra.mxu0 0.0
    %1281 = vmatprep.subr.mxu0 0.0
    %1282 = vmatpush1.msra.mxu0 0.0
    %1283 = vmatprep.subr.mxu0 0.0
    %1284 = vmatpush1.msra.mxu0 0.0
    %1285 = vmatprep.subr.mxu0 0.0
    %1286 = vmatpush1.msra.mxu0 0.0
    %1287 = vmatprep.mubr.f32.mxu0 0.0
    %1288 = vmatmul.mubr.f32.gmra.mrb[0].mxu0 %v1221
    %v1289 = vpop.f32.mrb[0].mxu0
    %v1290 = vadd.f32 %v897, %v1289
    %v1291 = vpop.f32.mrb[0].mxu0
    %1292 = vdwg.mxu0
    %v1293 = vtanh.pop %v1290
    %1294 = vst.msk [vmem:[#allocation3 + $0x8] sm:$0x3] %vm217, %v1293
    %1296 = vrot.lane.b32.xlu0 %v1293, 64
    %v1297 = vpop.permute.xlu0 %1296
    %1299 = vst.msk [vmem:[#allocation3 + $0x6] sm:$0x3] %vm223, %v1297
    %v1301 = vrot.slane %v897, 2
    %v1303 = vsel %vm61, %v1293, 0
    %1305 = vmatprep.subr.mxu0 0.0
    %1306 = vmatpush1.msra.mxu0 %v810
    %1307 = vmatprep.subr.mxu0 0.0
    %1308 = vmatpush1.msra.mxu0 %v811
    %1309 = vmatprep.subr.mxu0 0.0
    %1310 = vmatpush1.msra.mxu0 %v812
    %1311 = vmatprep.subr.mxu0 0.0
    %1312 = vmatpush1.msra.mxu0 %v813
    %1313 = vmatprep.subr.mxu0 0.0
    %1314 = vmatpush1.msra.mxu0 %v814
    %1315 = vmatprep.subr.mxu0 0.0
    %1316 = vmatpush1.msra.mxu0 %v815
    %1317 = vmatprep.subr.mxu0 0.0
    %1318 = vmatpush1.msra.mxu0 %v816
    %1319 = vmatprep.subr.mxu0 0.0
    %1320 = vmatpush1.msra.mxu0 %v817
    %1321 = vmatprep.subr.mxu0 0.0
    %1322 = vmatpush1.msra.mxu0 0.0
    %1323 = vmatprep.subr.mxu0 0.0
    %1324 = vmatpush1.msra.mxu0 0.0
    %1325 = vmatprep.subr.mxu0 0.0
    %1326 = vmatpush1.msra.mxu0 0.0
    %1327 = vmatprep.subr.mxu0 0.0
    %1328 = vmatpush1.msra.mxu0 0.0
    %1329 = vmatprep.subr.mxu0 0.0
    %1330 = vmatpush1.msra.mxu0 0.0
    %1331 = vmatprep.subr.mxu0 0.0
    %1332 = vmatpush1.msra.mxu0 0.0
    %1333 = vmatprep.subr.mxu0 0.0
    %1334 = vmatpush1.msra.mxu0 0.0
    %1335 = vmatprep.subr.mxu0 0.0
    %1336 = vmatpush1.msra.mxu0 0.0
    %1337 = vmatprep.subr.mxu0 0.0
    %1338 = vmatpush1.msra.mxu0 0.0
    %1339 = vmatprep.subr.mxu0 0.0
    %1340 = vmatpush1.msra.mxu0 0.0
    %1341 = vmatprep.subr.mxu0 0.0
    %1342 = vmatpush1.msra.mxu0 0.0
    %1343 = vmatprep.subr.mxu0 0.0
    %1344 = vmatpush1.msra.mxu0 0.0
    %1345 = vmatprep.subr.mxu0 0.0
    %1346 = vmatpush1.msra.mxu0 0.0
    %1347 = vmatprep.subr.mxu0 0.0
    %1348 = vmatpush1.msra.mxu0 0.0
    %1349 = vmatprep.subr.mxu0 0.0
    %1350 = vmatpush1.msra.mxu0 0.0
    %1351 = vmatprep.subr.mxu0 0.0
    %1352 = vmatpush1.msra.mxu0 0.0
    %1353 = vmatprep.subr.mxu0 0.0
    %1354 = vmatpush1.msra.mxu0 0.0
    %1355 = vmatprep.subr.mxu0 0.0
    %1356 = vmatpush1.msra.mxu0 0.0
    %1357 = vmatprep.subr.mxu0 0.0
    %1358 = vmatpush1.msra.mxu0 0.0
    %1359 = vmatprep.subr.mxu0 0.0
    %1360 = vmatpush1.msra.mxu0 0.0
    %1361 = vmatprep.subr.mxu0 0.0
    %1362 = vmatpush1.msra.mxu0 0.0
    %1363 = vmatprep.subr.mxu0 0.0
    %1364 = vmatpush1.msra.mxu0 0.0
    %1365 = vmatprep.subr.mxu0 0.0
    %1366 = vmatpush1.msra.mxu0 0.0
    %1367 = vmatprep.subr.mxu0 0.0
    %1368 = vmatpush1.msra.mxu0 0.0
    %1369 = vmatprep.mubr.f32.mxu0 0.0
    %1370 = vmatmul.mubr.f32.gmra.mrb[0].mxu0 %v1303
    %v1371 = vpop.f32.mrb[0].mxu0
    %v1372 = vadd.f32 %v1301, %v1371
    %v1373 = vpop.f32.mrb[0].mxu0
    %1374 = vdwg.mxu0
    %v1375 = vtanh.pop %v1372
    %1376 = vst.msk [vmem:[#allocation3 + $0xa] sm:$0x3] %vm217, %v1375
    %1378 = vrot.lane.b32.xlu0 %v1375, 64
    %v1379 = vpop.permute.xlu0 %1378
    %1381 = vst.msk [vmem:[#allocation3 + $0x4] sm:$0x3] %vm223, %v1379
    %v1382 = vrot.slane %v897, 4
    %v1384 = vsel %vm61, %v1375, 0
    %1386 = vmatprep.subr.mxu0 0.0
    %1387 = vmatpush1.msra.mxu0 %v810
    %1388 = vmatprep.subr.mxu0 0.0
    %1389 = vmatpush1.msra.mxu0 %v811
    %1390 = vmatprep.subr.mxu0 0.0
    %1391 = vmatpush1.msra.mxu0 %v812
    %1392 = vmatprep.subr.mxu0 0.0
    %1393 = vmatpush1.msra.mxu0 %v813
    %1394 = vmatprep.subr.mxu0 0.0
    %1395 = vmatpush1.msra.mxu0 %v814
    %1396 = vmatprep.subr.mxu0 0.0
    %1397 = vmatpush1.msra.mxu0 %v815
    %1398 = vmatprep.subr.mxu0 0.0
    %1399 = vmatpush1.msra.mxu0 %v816
    %1400 = vmatprep.subr.mxu0 0.0
    %1401 = vmatpush1.msra.mxu0 %v817
    %1402 = vmatprep.subr.mxu0 0.0
    %1403 = vmatpush1.msra.mxu0 0.0
    %1404 = vmatprep.subr.mxu0 0.0
    %1405 = vmatpush1.msra.mxu0 0.0
    %1406 = vmatprep.subr.mxu0 0.0
    %1407 = vmatpush1.msra.mxu0 0.0
    %1408 = vmatprep.subr.mxu0 0.0
    %1409 = vmatpush1.msra.mxu0 0.0
    %1410 = vmatprep.subr.mxu0 0.0
    %1411 = vmatpush1.msra.mxu0 0.0
    %1412 = vmatprep.subr.mxu0 0.0
    %1413 = vmatpush1.msra.mxu0 0.0
    %1414 = vmatprep.subr.mxu0 0.0
    %1415 = vmatpush1.msra.mxu0 0.0
    %1416 = vmatprep.subr.mxu0 0.0
    %1417 = vmatpush1.msra.mxu0 0.0
    %1418 = vmatprep.subr.mxu0 0.0
    %1419 = vmatpush1.msra.mxu0 0.0
    %1420 = vmatprep.subr.mxu0 0.0
    %1421 = vmatpush1.msra.mxu0 0.0
    %1422 = vmatprep.subr.mxu0 0.0
    %1423 = vmatpush1.msra.mxu0 0.0
    %1424 = vmatprep.subr.mxu0 0.0
    %1425 = vmatpush1.msra.mxu0 0.0
    %1426 = vmatprep.subr.mxu0 0.0
    %1427 = vmatpush1.msra.mxu0 0.0
    %1428 = vmatprep.subr.mxu0 0.0
    %1429 = vmatpush1.msra.mxu0 0.0
    %1430 = vmatprep.subr.mxu0 0.0
    %1431 = vmatpush1.msra.mxu0 0.0
    %1432 = vmatprep.subr.mxu0 0.0
    %1433 = vmatpush1.msra.mxu0 0.0
    %1434 = vmatprep.subr.mxu0 0.0
    %1435 = vmatpush1.msra.mxu0 0.0
    %1436 = vmatprep.subr.mxu0 0.0
    %1437 = vmatpush1.msra.mxu0 0.0
    %1438 = vmatprep.subr.mxu0 0.0
    %1439 = vmatpush1.msra.mxu0 0.0
    %1440 = vmatprep.subr.mxu0 0.0
    %1441 = vmatpush1.msra.mxu0 0.0
    %1442 = vmatprep.subr.mxu0 0.0
    %1443 = vmatpush1.msra.mxu0 0.0
    %1444 = vmatprep.subr.mxu0 0.0
    %1445 = vmatpush1.msra.mxu0 0.0
    %1446 = vmatprep.subr.mxu0 0.0
    %1447 = vmatpush1.msra.mxu0 0.0
    %1448 = vmatprep.subr.mxu0 0.0
    %1449 = vmatpush1.msra.mxu0 0.0
    %1450 = vmatprep.mubr.f32.mxu0 0.0
    %1451 = vmatmul.mubr.f32.gmra.mrb[0].mxu0 %v1384
    %v1452 = vpop.f32.mrb[0].mxu0
    %v1453 = vadd.f32 %v1382, %v1452
    %v1454 = vpop.f32.mrb[0].mxu0
    %1455 = vdwg.mxu0
    %v1456 = vtanh.pop %v1453
    %1457 = vst.msk [vmem:[#allocation3 + $0xc] sm:$0x3] %vm217, %v1456
    %1459 = vrot.lane.b32.xlu0 %v1456, 64
    %v1460 = vpop.permute.xlu0 %1459
    %1462 = vst.msk [vmem:[#allocation3 + $0x2] sm:$0x3] %vm223, %v1460
    %v1463 = vrot.slane %v897, 6
    %v1465 = vsel %vm61, %v1456, 0
    %1467 = vmatprep.subr.mxu0 0.0
    %1468 = vmatpush1.msra.mxu0 %v810
    %1469 = vmatprep.subr.mxu0 0.0
    %1470 = vmatpush1.msra.mxu0 %v811
    %1471 = vmatprep.subr.mxu0 0.0
    %1472 = vmatpush1.msra.mxu0 %v812
    %1473 = vmatprep.subr.mxu0 0.0
    %1474 = vmatpush1.msra.mxu0 %v813
    %1475 = vmatprep.subr.mxu0 0.0
    %1476 = vmatpush1.msra.mxu0 %v814
    %1477 = vmatprep.subr.mxu0 0.0
    %1478 = vmatpush1.msra.mxu0 %v815
    %1479 = vmatprep.subr.mxu0 0.0
    %1480 = vmatpush1.msra.mxu0 %v816
    %1481 = vmatprep.subr.mxu0 0.0
    %1482 = vmatpush1.msra.mxu0 %v817
    %1483 = vmatprep.subr.mxu0 0.0
    %1484 = vmatpush1.msra.mxu0 0.0
    %1485 = vmatprep.subr.mxu0 0.0
    %1486 = vmatpush1.msra.mxu0 0.0
    %1487 = vmatprep.subr.mxu0 0.0
    %1488 = vmatpush1.msra.mxu0 0.0
    %1489 = vmatprep.subr.mxu0 0.0
    %1490 = vmatpush1.msra.mxu0 0.0
    %1491 = vmatprep.subr.mxu0 0.0
    %1492 = vmatpush1.msra.mxu0 0.0
    %1493 = vmatprep.subr.mxu0 0.0
    %1494 = vmatpush1.msra.mxu0 0.0
    %1495 = vmatprep.subr.mxu0 0.0
    %1496 = vmatpush1.msra.mxu0 0.0
    %1497 = vmatprep.subr.mxu0 0.0
    %1498 = vmatpush1.msra.mxu0 0.0
    %1499 = vmatprep.subr.mxu0 0.0
    %1500 = vmatpush1.msra.mxu0 0.0
    %1501 = vmatprep.subr.mxu0 0.0
    %1502 = vmatpush1.msra.mxu0 0.0
    %1503 = vmatprep.subr.mxu0 0.0
    %1504 = vmatpush1.msra.mxu0 0.0
    %1505 = vmatprep.subr.mxu0 0.0
    %1506 = vmatpush1.msra.mxu0 0.0
    %1507 = vmatprep.subr.mxu0 0.0
    %1508 = vmatpush1.msra.mxu0 0.0
    %1509 = vmatprep.subr.mxu0 0.0
    %1510 = vmatpush1.msra.mxu0 0.0
    %1511 = vmatprep.subr.mxu0 0.0
    %1512 = vmatpush1.msra.mxu0 0.0
    %1513 = vmatprep.subr.mxu0 0.0
    %1514 = vmatpush1.msra.mxu0 0.0
    %1515 = vmatprep.subr.mxu0 0.0
    %1516 = vmatpush1.msra.mxu0 0.0
    %1517 = vmatprep.subr.mxu0 0.0
    %1518 = vmatpush1.msra.mxu0 0.0
    %1519 = vmatprep.subr.mxu0 0.0
    %1520 = vmatpush1.msra.mxu0 0.0
    %1521 = vmatprep.subr.mxu0 0.0
    %1522 = vmatpush1.msra.mxu0 0.0
    %1523 = vmatprep.subr.mxu0 0.0
    %1524 = vmatpush1.msra.mxu0 0.0
    %1525 = vmatprep.subr.mxu0 0.0
    %1526 = vmatpush1.msra.mxu0 0.0
    %1527 = vmatprep.subr.mxu0 0.0
    %1528 = vmatpush1.msra.mxu0 0.0
    %1529 = vmatprep.subr.mxu0 0.0
    %1530 = vmatpush1.msra.mxu0 0.0
    %1531 = vmatprep.mubr.f32.mxu0 0.0
    %1532 = vmatmul.mubr.f32.gmra.mrb[0].mxu0 %v1465
    %v1533 = vpop.f32.mrb[0].mxu0
    %v1534 = vadd.f32 %v1463, %v1533
    %v1535 = vpop.f32.mrb[0].mxu0
    %1536 = vdwg.mxu0
    %v1537 = vtanh.pop %v1534
    %1538 = vst.msk [vmem:[#allocation3 + $0xe] sm:$0x3] %vm217, %v1537
    %1540 = vrot.lane.b32.xlu0 %v1537, 64
    %v1541 = vpop.permute.xlu0 %1540
    %1543 = vst.msk [vmem:[#allocation3] sm:$0x3] %vm223, %v1541
    %v1544 = vld [vmem:[#allocation3] sm:$0xff]
    %v1545 = vld [vmem:[#allocation3 + $0x8] sm:$0xff]
    %v1546 = vld [vmem:[%s7] sm:$0xff]
    %v1547 = vld [vmem:[%s7 + $0x8] sm:$0xff]
    %v1548 = vld [vmem:[%s7 + $0x10] sm:$0xff]
    %v1549 = vld [vmem:[%s7 + $0x18] sm:$0xff]
    %v1550 = vld [vmem:[%s7 + $0x20] sm:$0xff]
    %v1551 = vld [vmem:[%s7 + $0x28] sm:$0xff]
    %v1552 = vld [vmem:[%s7 + $0x30] sm:$0xff]
    %v1553 = vld [vmem:[%s7 + $0x38] sm:$0xff]
    %v1554 = vld [vmem:[%s7 + $0x40] sm:$0xff]
    %v1555 = vld [vmem:[%s7 + $0x48] sm:$0xff]
    %v1556 = vld [vmem:[%s7 + $0x50] sm:$0xff]
    %v1557 = vld [vmem:[%s7 + $0x58] sm:$0xff]
    %v1558 = vld [vmem:[%s7 + $0x60] sm:$0xff]
    %v1559 = vld [vmem:[%s7 + $0x68] sm:$0xff]
    %v1560 = vld [vmem:[%s7 + $0x70] sm:$0xff]
    %v1561 = vld [vmem:[%s7 + $0x78] sm:$0xff]
    %v1562 = vld [vmem:[%s8] sm:$0xff]
    %v1563 = vld [vmem:[%s8 + $0x8] sm:$0xff]
    %v1564 = vld [vmem:[%s8 + $0x10] sm:$0xff]
    %v1565 = vld [vmem:[%s8 + $0x18] sm:$0xff]
    %v1566 = vld [vmem:[%s8 + $0x20] sm:$0xff]
    %v1567 = vld [vmem:[%s8 + $0x28] sm:$0xff]
    %v1568 = vld [vmem:[%s8 + $0x30] sm:$0xff]
    %v1569 = vld [vmem:[%s8 + $0x38] sm:$0xff]
    %v1570 = vld [vmem:[%s9] sm:$0x1]
    %v1572 = vlaneseq
    %v1573 = vshrl.u32 %v1572, 7
    %v1574 = vsub.s32 0, %v1573
    %v1575 = vrot.slane %v1570, %v1574
    %1577 = vmatprep.subr.mxu0 0.0
    %1578 = vmatpush1.msra.mxu0 %v1546
    %1579 = vmatprep.subr.mxu0 0.0
    %1580 = vmatpush1.msra.mxu0 %v1547
    %1581 = vmatprep.subr.mxu0 0.0
    %1582 = vmatpush1.msra.mxu0 %v1548
    %1583 = vmatprep.subr.mxu0 0.0
    %1584 = vmatpush1.msra.mxu0 %v1549
    %1585 = vmatprep.subr.mxu0 0.0
    %1586 = vmatpush1.msra.mxu0 %v1550
    %1587 = vmatprep.subr.mxu0 0.0
    %1588 = vmatpush1.msra.mxu0 %v1551
    %1589 = vmatprep.subr.mxu0 0.0
    %1590 = vmatpush1.msra.mxu0 %v1552
    %1591 = vmatprep.subr.mxu0 0.0
    %1592 = vmatpush1.msra.mxu0 %v1553
    %1593 = vmatprep.subr.mxu0 0.0
    %1594 = vmatpush1.msra.mxu0 %v1554
    %1595 = vmatprep.subr.mxu0 0.0
    %1596 = vmatpush1.msra.mxu0 %v1555
    %1597 = vmatprep.subr.mxu0 0.0
    %1598 = vmatpush1.msra.mxu0 %v1556
    %1599 = vmatprep.subr.mxu0 0.0
    %1600 = vmatpush1.msra.mxu0 %v1557
    %1601 = vmatprep.subr.mxu0 0.0
    %1602 = vmatpush1.msra.mxu0 %v1558
    %1603 = vmatprep.subr.mxu0 0.0
    %1604 = vmatpush1.msra.mxu0 %v1559
    %1605 = vmatprep.subr.mxu0 0.0
    %1606 = vmatpush1.msra.mxu0 %v1560
    %1607 = vmatprep.subr.mxu0 0.0
    %1608 = vmatpush1.msra.mxu0 %v1561
    %1609 = vmatprep.subr.mxu0 0.0
    %1610 = vmatpush1.msra.mxu0 0.0
    %1611 = vmatprep.subr.mxu0 0.0
    %1612 = vmatpush1.msra.mxu0 0.0
    %1613 = vmatprep.subr.mxu0 0.0
    %1614 = vmatpush1.msra.mxu0 0.0
    %1615 = vmatprep.subr.mxu0 0.0
    %1616 = vmatpush1.msra.mxu0 0.0
    %1617 = vmatprep.subr.mxu0 0.0
    %1618 = vmatpush1.msra.mxu0 0.0
    %1619 = vmatprep.subr.mxu0 0.0
    %1620 = vmatpush1.msra.mxu0 0.0
    %1621 = vmatprep.subr.mxu0 0.0
    %1622 = vmatpush1.msra.mxu0 0.0
    %1623 = vmatprep.subr.mxu0 0.0
    %1624 = vmatpush1.msra.mxu0 0.0
    %1625 = vmatprep.subr.mxu0 0.0
    %1626 = vmatpush1.msra.mxu0 0.0
    %1627 = vmatprep.subr.mxu0 0.0
    %1628 = vmatpush1.msra.mxu0 0.0
    %1629 = vmatprep.subr.mxu0 0.0
    %1630 = vmatpush1.msra.mxu0 0.0
    %1631 = vmatprep.subr.mxu0 0.0
    %1632 = vmatpush1.msra.mxu0 0.0
    %1633 = vmatprep.subr.mxu0 0.0
    %1634 = vmatpush1.msra.mxu0 0.0
    %1635 = vmatprep.subr.mxu0 0.0
    %1636 = vmatpush1.msra.mxu0 0.0
    %1637 = vmatprep.subr.mxu0 0.0
    %1638 = vmatpush1.msra.mxu0 0.0
    %1639 = vmatprep.subr.mxu0 0.0
    %1640 = vmatpush1.msra.mxu0 0.0
    %1641 = vmatprep.mubr.f32.mxu0 0.0
    %1642 = vmatmul.mubr.f32.gmra.mrb[0].mxu0 %v1544
    %v1643 = vpop.f32.mrb[0].mxu0
    %v1644 = vadd.f32 %v1575, %v1643
    %v1645 = vpop.f32.mrb[0].mxu0
    %1646 = vmatprep.mubr.f32.mxu0 0.0
    %1647 = vmatmul.mubr.f32.gmra.mrb[0].mxu0 %v1545
    %v1648 = vpop.f32.mrb[0].mxu0
    %v1649 = vadd.f32 %v1575, %v1648
    %v1650 = vpop.f32.mrb[0].mxu0
    %1651 = vdwg.mxu0
    %1652 = vmatprep.subr.mxu0 0.0
    %1653 = vmatpush1.msra.mxu0 %v1562
    %1654 = vmatprep.subr.mxu0 0.0
    %1655 = vmatpush1.msra.mxu0 %v1563
    %1656 = vmatprep.subr.mxu0 0.0
    %1657 = vmatpush1.msra.mxu0 %v1564
    %1658 = vmatprep.subr.mxu0 0.0
    %1659 = vmatpush1.msra.mxu0 %v1565
    %1660 = vmatprep.subr.mxu0 0.0
    %1661 = vmatpush1.msra.mxu0 %v1566
    %1662 = vmatprep.subr.mxu0 0.0
    %1663 = vmatpush1.msra.mxu0 %v1567
    %1664 = vmatprep.subr.mxu0 0.0
    %1665 = vmatpush1.msra.mxu0 %v1568
    %1666 = vmatprep.subr.mxu0 0.0
    %1667 = vmatpush1.msra.mxu0 %v1569
    %1668 = vmatprep.subr.mxu0 0.0
    %1669 = vmatpush1.msra.mxu0 0.0
    %1670 = vmatprep.subr.mxu0 0.0
    %1671 = vmatpush1.msra.mxu0 0.0
    %1672 = vmatprep.subr.mxu0 0.0
    %1673 = vmatpush1.msra.mxu0 0.0
    %1674 = vmatprep.subr.mxu0 0.0
    %1675 = vmatpush1.msra.mxu0 0.0
    %1676 = vmatprep.subr.mxu0 0.0
    %1677 = vmatpush1.msra.mxu0 0.0
    %1678 = vmatprep.subr.mxu0 0.0
    %1679 = vmatpush1.msra.mxu0 0.0
    %1680 = vmatprep.subr.mxu0 0.0
    %1681 = vmatpush1.msra.mxu0 0.0
    %1682 = vmatprep.subr.mxu0 0.0
    %1683 = vmatpush1.msra.mxu0 0.0
    %1684 = vmatprep.subr.mxu0 0.0
    %1685 = vmatpush1.msra.mxu0 0.0
    %1686 = vmatprep.subr.mxu0 0.0
    %1687 = vmatpush1.msra.mxu0 0.0
    %1688 = vmatprep.subr.mxu0 0.0
    %1689 = vmatpush1.msra.mxu0 0.0
    %1690 = vmatprep.subr.mxu0 0.0
    %1691 = vmatpush1.msra.mxu0 0.0
    %1692 = vmatprep.subr.mxu0 0.0
    %1693 = vmatpush1.msra.mxu0 0.0
    %1694 = vmatprep.subr.mxu0 0.0
    %1695 = vmatpush1.msra.mxu0 0.0
    %1696 = vmatprep.subr.mxu0 0.0
    %1697 = vmatpush1.msra.mxu0 0.0
    %1698 = vmatprep.subr.mxu0 0.0
    %1699 = vmatpush1.msra.mxu0 0.0
    %1700 = vmatprep.subr.mxu0 0.0
    %1701 = vmatpush1.msra.mxu0 0.0
    %1702 = vmatprep.subr.mxu0 0.0
    %1703 = vmatpush1.msra.mxu0 0.0
    %1704 = vmatprep.subr.mxu0 0.0
    %1705 = vmatpush1.msra.mxu0 0.0
    %1706 = vmatprep.subr.mxu0 0.0
    %1707 = vmatpush1.msra.mxu0 0.0
    %1708 = vmatprep.subr.mxu0 0.0
    %1709 = vmatpush1.msra.mxu0 0.0
    %1710 = vmatprep.subr.mxu0 0.0
    %1711 = vmatpush1.msra.mxu0 0.0
    %1712 = vmatprep.subr.mxu0 0.0
    %1713 = vmatpush1.msra.mxu0 0.0
    %1714 = vmatprep.subr.mxu0 0.0
    %1715 = vmatpush1.msra.mxu0 0.0
    %1716 = vmatprep.mubr.f32.mxu0 0.0
    %1717 = vmatmul.mubr.f32.gmra.mrb[0].mxu0 %v144
    %v1718 = vpop.f32.mrb[0].mxu0
    %v1719 = vadd.f32 %v1644, %v1718
    %v1720 = vpop.f32.mrb[0].mxu0
    %1721 = vdwg.mxu0
    %v1722 = vtanh.pop %v1719
    %vm1723 = vcmask 253952
    %1724 = vst.msk [vmem:[#allocation4] sm:$0x1] %vm1723, %v1722
    %vm1725 = vcmask 516352
    %1726 = vst.msk [vmem:[#allocation4 + $0x7] sm:$0x1] %vm1725, %v1722
    %v1728 = vrot.slane %v1644, 2
    %v1731 = vsel %vm61, %v1722, 0
    %1733 = vmatprep.subr.mxu0 0.0
    %1734 = vmatpush1.msra.mxu0 %v1562
    %1735 = vmatprep.subr.mxu0 0.0
    %1736 = vmatpush1.msra.mxu0 %v1563
    %1737 = vmatprep.subr.mxu0 0.0
    %1738 = vmatpush1.msra.mxu0 %v1564
    %1739 = vmatprep.subr.mxu0 0.0
    %1740 = vmatpush1.msra.mxu0 %v1565
    %1741 = vmatprep.subr.mxu0 0.0
    %1742 = vmatpush1.msra.mxu0 %v1566
    %1743 = vmatprep.subr.mxu0 0.0
    %1744 = vmatpush1.msra.mxu0 %v1567
    %1745 = vmatprep.subr.mxu0 0.0
    %1746 = vmatpush1.msra.mxu0 %v1568
    %1747 = vmatprep.subr.mxu0 0.0
    %1748 = vmatpush1.msra.mxu0 %v1569
    %1749 = vmatprep.subr.mxu0 0.0
    %1750 = vmatpush1.msra.mxu0 0.0
    %1751 = vmatprep.subr.mxu0 0.0
    %1752 = vmatpush1.msra.mxu0 0.0
    %1753 = vmatprep.subr.mxu0 0.0
    %1754 = vmatpush1.msra.mxu0 0.0
    %1755 = vmatprep.subr.mxu0 0.0
    %1756 = vmatpush1.msra.mxu0 0.0
    %1757 = vmatprep.subr.mxu0 0.0
    %1758 = vmatpush1.msra.mxu0 0.0
    %1759 = vmatprep.subr.mxu0 0.0
    %1760 = vmatpush1.msra.mxu0 0.0
    %1761 = vmatprep.subr.mxu0 0.0
    %1762 = vmatpush1.msra.mxu0 0.0
    %1763 = vmatprep.subr.mxu0 0.0
    %1764 = vmatpush1.msra.mxu0 0.0
    %1765 = vmatprep.subr.mxu0 0.0
    %1766 = vmatpush1.msra.mxu0 0.0
    %1767 = vmatprep.subr.mxu0 0.0
    %1768 = vmatpush1.msra.mxu0 0.0
    %1769 = vmatprep.subr.mxu0 0.0
    %1770 = vmatpush1.msra.mxu0 0.0
    %1771 = vmatprep.subr.mxu0 0.0
    %1772 = vmatpush1.msra.mxu0 0.0
    %1773 = vmatprep.subr.mxu0 0.0
    %1774 = vmatpush1.msra.mxu0 0.0
    %1775 = vmatprep.subr.mxu0 0.0
    %1776 = vmatpush1.msra.mxu0 0.0
    %1777 = vmatprep.subr.mxu0 0.0
    %1778 = vmatpush1.msra.mxu0 0.0
    %1779 = vmatprep.subr.mxu0 0.0
    %1780 = vmatpush1.msra.mxu0 0.0
    %1781 = vmatprep.subr.mxu0 0.0
    %1782 = vmatpush1.msra.mxu0 0.0
    %1783 = vmatprep.subr.mxu0 0.0
    %1784 = vmatpush1.msra.mxu0 0.0
    %1785 = vmatprep.subr.mxu0 0.0
    %1786 = vmatpush1.msra.mxu0 0.0
    %1787 = vmatprep.subr.mxu0 0.0
    %1788 = vmatpush1.msra.mxu0 0.0
    %1789 = vmatprep.subr.mxu0 0.0
    %1790 = vmatpush1.msra.mxu0 0.0
    %1791 = vmatprep.subr.mxu0 0.0
    %1792 = vmatpush1.msra.mxu0 0.0
    %1793 = vmatprep.subr.mxu0 0.0
    %1794 = vmatpush1.msra.mxu0 0.0
    %1795 = vmatprep.subr.mxu0 0.0
    %1796 = vmatpush1.msra.mxu0 0.0
    %1797 = vmatprep.mubr.f32.mxu0 0.0
    %1798 = vmatmul.mubr.f32.gmra.mrb[0].mxu0 %v1731
    %v1799 = vpop.f32.mrb[0].mxu0
    %v1800 = vadd.f32 %v1728, %v1799
    %v1801 = vpop.f32.mrb[0].mxu0
    %1802 = vdwg.mxu0
    %v1803 = vtanh.pop %v1800
    %1804 = vst.msk [vmem:[#allocation4 + $0x1] sm:$0x1] %vm1723, %v1803
    %1805 = vst.msk [vmem:[#allocation4 + $0x6] sm:$0x1] %vm1725, %v1803
    %v1806 = vrot.slane %v1644, 4
    %v1809 = vsel %vm61, %v1803, 0
    %1811 = vmatprep.subr.mxu0 0.0
    %1812 = vmatpush1.msra.mxu0 %v1562
    %1813 = vmatprep.subr.mxu0 0.0
    %1814 = vmatpush1.msra.mxu0 %v1563
    %1815 = vmatprep.subr.mxu0 0.0
    %1816 = vmatpush1.msra.mxu0 %v1564
    %1817 = vmatprep.subr.mxu0 0.0
    %1818 = vmatpush1.msra.mxu0 %v1565
    %1819 = vmatprep.subr.mxu0 0.0
    %1820 = vmatpush1.msra.mxu0 %v1566
    %1821 = vmatprep.subr.mxu0 0.0
    %1822 = vmatpush1.msra.mxu0 %v1567
    %1823 = vmatprep.subr.mxu0 0.0
    %1824 = vmatpush1.msra.mxu0 %v1568
    %1825 = vmatprep.subr.mxu0 0.0
    %1826 = vmatpush1.msra.mxu0 %v1569
    %1827 = vmatprep.subr.mxu0 0.0
    %1828 = vmatpush1.msra.mxu0 0.0
    %1829 = vmatprep.subr.mxu0 0.0
    %1830 = vmatpush1.msra.mxu0 0.0
    %1831 = vmatprep.subr.mxu0 0.0
    %1832 = vmatpush1.msra.mxu0 0.0
    %1833 = vmatprep.subr.mxu0 0.0
    %1834 = vmatpush1.msra.mxu0 0.0
    %1835 = vmatprep.subr.mxu0 0.0
    %1836 = vmatpush1.msra.mxu0 0.0
    %1837 = vmatprep.subr.mxu0 0.0
    %1838 = vmatpush1.msra.mxu0 0.0
    %1839 = vmatprep.subr.mxu0 0.0
    %1840 = vmatpush1.msra.mxu0 0.0
    %1841 = vmatprep.subr.mxu0 0.0
    %1842 = vmatpush1.msra.mxu0 0.0
    %1843 = vmatprep.subr.mxu0 0.0
    %1844 = vmatpush1.msra.mxu0 0.0
    %1845 = vmatprep.subr.mxu0 0.0
    %1846 = vmatpush1.msra.mxu0 0.0
    %1847 = vmatprep.subr.mxu0 0.0
    %1848 = vmatpush1.msra.mxu0 0.0
    %1849 = vmatprep.subr.mxu0 0.0
    %1850 = vmatpush1.msra.mxu0 0.0
    %1851 = vmatprep.subr.mxu0 0.0
    %1852 = vmatpush1.msra.mxu0 0.0
    %1853 = vmatprep.subr.mxu0 0.0
    %1854 = vmatpush1.msra.mxu0 0.0
    %1855 = vmatprep.subr.mxu0 0.0
    %1856 = vmatpush1.msra.mxu0 0.0
    %1857 = vmatprep.subr.mxu0 0.0
    %1858 = vmatpush1.msra.mxu0 0.0
    %1859 = vmatprep.subr.mxu0 0.0
    %1860 = vmatpush1.msra.mxu0 0.0
    %1861 = vmatprep.subr.mxu0 0.0
    %1862 = vmatpush1.msra.mxu0 0.0
    %1863 = vmatprep.subr.mxu0 0.0
    %1864 = vmatpush1.msra.mxu0 0.0
    %1865 = vmatprep.subr.mxu0 0.0
    %1866 = vmatpush1.msra.mxu0 0.0
    %1867 = vmatprep.subr.mxu0 0.0
    %1868 = vmatpush1.msra.mxu0 0.0
    %1869 = vmatprep.subr.mxu0 0.0
    %1870 = vmatpush1.msra.mxu0 0.0
    %1871 = vmatprep.subr.mxu0 0.0
    %1872 = vmatpush1.msra.mxu0 0.0
    %1873 = vmatprep.subr.mxu0 0.0
    %1874 = vmatpush1.msra.mxu0 0.0
    %1875 = vmatprep.mubr.f32.mxu0 0.0
    %1876 = vmatmul.mubr.f32.gmra.mrb[0].mxu0 %v1809
    %v1877 = vpop.f32.mrb[0].mxu0
    %v1878 = vadd.f32 %v1806, %v1877
    %v1879 = vpop.f32.mrb[0].mxu0
    %1880 = vdwg.mxu0
    %v1881 = vtanh.pop %v1878
    %1882 = vst.msk [vmem:[#allocation4 + $0x2] sm:$0x1] %vm1723, %v1881
    %1883 = vst.msk [vmem:[#allocation4 + $0x5] sm:$0x1] %vm1725, %v1881
    %v1884 = vrot.slane %v1644, 6
    %v1887 = vsel %vm61, %v1881, 0
    %1889 = vmatprep.subr.mxu0 0.0
    %1890 = vmatpush1.msra.mxu0 %v1562
    %1891 = vmatprep.subr.mxu0 0.0
    %1892 = vmatpush1.msra.mxu0 %v1563
    %1893 = vmatprep.subr.mxu0 0.0
    %1894 = vmatpush1.msra.mxu0 %v1564
    %1895 = vmatprep.subr.mxu0 0.0
    %1896 = vmatpush1.msra.mxu0 %v1565
    %1897 = vmatprep.subr.mxu0 0.0
    %1898 = vmatpush1.msra.mxu0 %v1566
    %1899 = vmatprep.subr.mxu0 0.0
    %1900 = vmatpush1.msra.mxu0 %v1567
    %1901 = vmatprep.subr.mxu0 0.0
    %1902 = vmatpush1.msra.mxu0 %v1568
    %1903 = vmatprep.subr.mxu0 0.0
    %1904 = vmatpush1.msra.mxu0 %v1569
    %1905 = vmatprep.subr.mxu0 0.0
    %1906 = vmatpush1.msra.mxu0 0.0
    %1907 = vmatprep.subr.mxu0 0.0
    %1908 = vmatpush1.msra.mxu0 0.0
    %1909 = vmatprep.subr.mxu0 0.0
    %1910 = vmatpush1.msra.mxu0 0.0
    %1911 = vmatprep.subr.mxu0 0.0
    %1912 = vmatpush1.msra.mxu0 0.0
    %1913 = vmatprep.subr.mxu0 0.0
    %1914 = vmatpush1.msra.mxu0 0.0
    %1915 = vmatprep.subr.mxu0 0.0
    %1916 = vmatpush1.msra.mxu0 0.0
    %1917 = vmatprep.subr.mxu0 0.0
    %1918 = vmatpush1.msra.mxu0 0.0
    %1919 = vmatprep.subr.mxu0 0.0
    %1920 = vmatpush1.msra.mxu0 0.0
    %1921 = vmatprep.subr.mxu0 0.0
    %1922 = vmatpush1.msra.mxu0 0.0
    %1923 = vmatprep.subr.mxu0 0.0
    %1924 = vmatpush1.msra.mxu0 0.0
    %1925 = vmatprep.subr.mxu0 0.0
    %1926 = vmatpush1.msra.mxu0 0.0
    %1927 = vmatprep.subr.mxu0 0.0
    %1928 = vmatpush1.msra.mxu0 0.0
    %1929 = vmatprep.subr.mxu0 0.0
    %1930 = vmatpush1.msra.mxu0 0.0
    %1931 = vmatprep.subr.mxu0 0.0
    %1932 = vmatpush1.msra.mxu0 0.0
    %1933 = vmatprep.subr.mxu0 0.0
    %1934 = vmatpush1.msra.mxu0 0.0
    %1935 = vmatprep.subr.mxu0 0.0
    %1936 = vmatpush1.msra.mxu0 0.0
    %1937 = vmatprep.subr.mxu0 0.0
    %1938 = vmatpush1.msra.mxu0 0.0
    %1939 = vmatprep.subr.mxu0 0.0
    %1940 = vmatpush1.msra.mxu0 0.0
    %1941 = vmatprep.subr.mxu0 0.0
    %1942 = vmatpush1.msra.mxu0 0.0
    %1943 = vmatprep.subr.mxu0 0.0
    %1944 = vmatpush1.msra.mxu0 0.0
    %1945 = vmatprep.subr.mxu0 0.0
    %1946 = vmatpush1.msra.mxu0 0.0
    %1947 = vmatprep.subr.mxu0 0.0
    %1948 = vmatpush1.msra.mxu0 0.0
    %1949 = vmatprep.subr.mxu0 0.0
    %1950 = vmatpush1.msra.mxu0 0.0
    %1951 = vmatprep.subr.mxu0 0.0
    %1952 = vmatpush1.msra.mxu0 0.0
    %1953 = vmatprep.mubr.f32.mxu0 0.0
    %1954 = vmatmul.mubr.f32.gmra.mrb[0].mxu0 %v1887
    %v1955 = vpop.f32.mrb[0].mxu0
    %v1956 = vadd.f32 %v1884, %v1955
    %v1957 = vpop.f32.mrb[0].mxu0
    %1958 = vdwg.mxu0
    %v1959 = vtanh.pop %v1956
    %1960 = vst.msk [vmem:[#allocation4 + $0x3] sm:$0x1] %vm1723, %v1959
    %1961 = vst.msk [vmem:[#allocation4 + $0x4] sm:$0x1] %vm1725, %v1959
    %v1963 = vsel %vm61, %v1959, 0
    %1965 = vmatprep.subr.mxu0 0.0
    %1966 = vmatpush1.msra.mxu0 %v1562
    %1967 = vmatprep.subr.mxu0 0.0
    %1968 = vmatpush1.msra.mxu0 %v1563
    %1969 = vmatprep.subr.mxu0 0.0
    %1970 = vmatpush1.msra.mxu0 %v1564
    %1971 = vmatprep.subr.mxu0 0.0
    %1972 = vmatpush1.msra.mxu0 %v1565
    %1973 = vmatprep.subr.mxu0 0.0
    %1974 = vmatpush1.msra.mxu0 %v1566
    %1975 = vmatprep.subr.mxu0 0.0
    %1976 = vmatpush1.msra.mxu0 %v1567
    %1977 = vmatprep.subr.mxu0 0.0
    %1978 = vmatpush1.msra.mxu0 %v1568
    %1979 = vmatprep.subr.mxu0 0.0
    %1980 = vmatpush1.msra.mxu0 %v1569
    %1981 = vmatprep.subr.mxu0 0.0
    %1982 = vmatpush1.msra.mxu0 0.0
    %1983 = vmatprep.subr.mxu0 0.0
    %1984 = vmatpush1.msra.mxu0 0.0
    %1985 = vmatprep.subr.mxu0 0.0
    %1986 = vmatpush1.msra.mxu0 0.0
    %1987 = vmatprep.subr.mxu0 0.0
    %1988 = vmatpush1.msra.mxu0 0.0
    %1989 = vmatprep.subr.mxu0 0.0
    %1990 = vmatpush1.msra.mxu0 0.0
    %1991 = vmatprep.subr.mxu0 0.0
    %1992 = vmatpush1.msra.mxu0 0.0
    %1993 = vmatprep.subr.mxu0 0.0
    %1994 = vmatpush1.msra.mxu0 0.0
    %1995 = vmatprep.subr.mxu0 0.0
    %1996 = vmatpush1.msra.mxu0 0.0
    %1997 = vmatprep.subr.mxu0 0.0
    %1998 = vmatpush1.msra.mxu0 0.0
    %1999 = vmatprep.subr.mxu0 0.0
    %2000 = vmatpush1.msra.mxu0 0.0
    %2001 = vmatprep.subr.mxu0 0.0
    %2002 = vmatpush1.msra.mxu0 0.0
    %2003 = vmatprep.subr.mxu0 0.0
    %2004 = vmatpush1.msra.mxu0 0.0
    %2005 = vmatprep.subr.mxu0 0.0
    %2006 = vmatpush1.msra.mxu0 0.0
    %2007 = vmatprep.subr.mxu0 0.0
    %2008 = vmatpush1.msra.mxu0 0.0
    %2009 = vmatprep.subr.mxu0 0.0
    %2010 = vmatpush1.msra.mxu0 0.0
    %2011 = vmatprep.subr.mxu0 0.0
    %2012 = vmatpush1.msra.mxu0 0.0
    %2013 = vmatprep.subr.mxu0 0.0
    %2014 = vmatpush1.msra.mxu0 0.0
    %2015 = vmatprep.subr.mxu0 0.0
    %2016 = vmatpush1.msra.mxu0 0.0
    %2017 = vmatprep.subr.mxu0 0.0
    %2018 = vmatpush1.msra.mxu0 0.0
    %2019 = vmatprep.subr.mxu0 0.0
    %2020 = vmatpush1.msra.mxu0 0.0
    %2021 = vmatprep.subr.mxu0 0.0
    %2022 = vmatpush1.msra.mxu0 0.0
    %2023 = vmatprep.subr.mxu0 0.0
    %2024 = vmatpush1.msra.mxu0 0.0
    %2025 = vmatprep.subr.mxu0 0.0
    %2026 = vmatpush1.msra.mxu0 0.0
    %2027 = vmatprep.subr.mxu0 0.0
    %2028 = vmatpush1.msra.mxu0 0.0
    %2029 = vmatprep.mubr.f32.mxu0 0.0
    %2030 = vmatmul.mubr.f32.gmra.mrb[0].mxu0 %v1963
    %v2031 = vpop.f32.mrb[0].mxu0
    %v2032 = vadd.f32 %v1649, %v2031
    %v2033 = vpop.f32.mrb[0].mxu0
    %2034 = vdwg.mxu0
    %v2035 = vtanh.pop %v2032
    %2036 = vst.msk [vmem:[#allocation4 + $0x4] sm:$0x1] %vm1723, %v2035
    %2037 = vst.msk [vmem:[#allocation4 + $0x3] sm:$0x1] %vm1725, %v2035
    %v2039 = vrot.slane %v1649, 2
    %v2042 = vsel %vm61, %v2035, 0
    %2044 = vmatprep.subr.mxu0 0.0
    %2045 = vmatpush1.msra.mxu0 %v1562
    %2046 = vmatprep.subr.mxu0 0.0
    %2047 = vmatpush1.msra.mxu0 %v1563
    %2048 = vmatprep.subr.mxu0 0.0
    %2049 = vmatpush1.msra.mxu0 %v1564
    %2050 = vmatprep.subr.mxu0 0.0
    %2051 = vmatpush1.msra.mxu0 %v1565
    %2052 = vmatprep.subr.mxu0 0.0
    %2053 = vmatpush1.msra.mxu0 %v1566
    %2054 = vmatprep.subr.mxu0 0.0
    %2055 = vmatpush1.msra.mxu0 %v1567
    %2056 = vmatprep.subr.mxu0 0.0
    %2057 = vmatpush1.msra.mxu0 %v1568
    %2058 = vmatprep.subr.mxu0 0.0
    %2059 = vmatpush1.msra.mxu0 %v1569
    %2060 = vmatprep.subr.mxu0 0.0
    %2061 = vmatpush1.msra.mxu0 0.0
    %2062 = vmatprep.subr.mxu0 0.0
    %2063 = vmatpush1.msra.mxu0 0.0
    %2064 = vmatprep.subr.mxu0 0.0
    %2065 = vmatpush1.msra.mxu0 0.0
    %2066 = vmatprep.subr.mxu0 0.0
    %2067 = vmatpush1.msra.mxu0 0.0
    %2068 = vmatprep.subr.mxu0 0.0
    %2069 = vmatpush1.msra.mxu0 0.0
    %2070 = vmatprep.subr.mxu0 0.0
    %2071 = vmatpush1.msra.mxu0 0.0
    %2072 = vmatprep.subr.mxu0 0.0
    %2073 = vmatpush1.msra.mxu0 0.0
    %2074 = vmatprep.subr.mxu0 0.0
    %2075 = vmatpush1.msra.mxu0 0.0
    %2076 = vmatprep.subr.mxu0 0.0
    %2077 = vmatpush1.msra.mxu0 0.0
    %2078 = vmatprep.subr.mxu0 0.0
    %2079 = vmatpush1.msra.mxu0 0.0
    %2080 = vmatprep.subr.mxu0 0.0
    %2081 = vmatpush1.msra.mxu0 0.0
    %2082 = vmatprep.subr.mxu0 0.0
    %2083 = vmatpush1.msra.mxu0 0.0
    %2084 = vmatprep.subr.mxu0 0.0
    %2085 = vmatpush1.msra.mxu0 0.0
    %2086 = vmatprep.subr.mxu0 0.0
    %2087 = vmatpush1.msra.mxu0 0.0
    %2088 = vmatprep.subr.mxu0 0.0
    %2089 = vmatpush1.msra.mxu0 0.0
    %2090 = vmatprep.subr.mxu0 0.0
    %2091 = vmatpush1.msra.mxu0 0.0
    %2092 = vmatprep.subr.mxu0 0.0
    %2093 = vmatpush1.msra.mxu0 0.0
    %2094 = vmatprep.subr.mxu0 0.0
    %2095 = vmatpush1.msra.mxu0 0.0
    %2096 = vmatprep.subr.mxu0 0.0
    %2097 = vmatpush1.msra.mxu0 0.0
    %2098 = vmatprep.subr.mxu0 0.0
    %2099 = vmatpush1.msra.mxu0 0.0
    %2100 = vmatprep.subr.mxu0 0.0
    %2101 = vmatpush1.msra.mxu0 0.0
    %2102 = vmatprep.subr.mxu0 0.0
    %2103 = vmatpush1.msra.mxu0 0.0
    %2104 = vmatprep.subr.mxu0 0.0
    %2105 = vmatpush1.msra.mxu0 0.0
    %2106 = vmatprep.subr.mxu0 0.0
    %2107 = vmatpush1.msra.mxu0 0.0
    %2108 = vmatprep.mubr.f32.mxu0 0.0
    %2109 = vmatmul.mubr.f32.gmra.mrb[0].mxu0 %v2042
    %v2110 = vpop.f32.mrb[0].mxu0
    %v2111 = vadd.f32 %v2039, %v2110
    %v2112 = vpop.f32.mrb[0].mxu0
    %2113 = vdwg.mxu0
    %v2114 = vtanh.pop %v2111
    %2115 = vst.msk [vmem:[#allocation4 + $0x5] sm:$0x1] %vm1723, %v2114
    %2116 = vst.msk [vmem:[#allocation4 + $0x2] sm:$0x1] %vm1725, %v2114
    %v2117 = vrot.slane %v1649, 4
    %v2120 = vsel %vm61, %v2114, 0
    %2122 = vmatprep.subr.mxu0 0.0
    %2123 = vmatpush1.msra.mxu0 %v1562
    %2124 = vmatprep.subr.mxu0 0.0
    %2125 = vmatpush1.msra.mxu0 %v1563
    %2126 = vmatprep.subr.mxu0 0.0
    %2127 = vmatpush1.msra.mxu0 %v1564
    %2128 = vmatprep.subr.mxu0 0.0
    %2129 = vmatpush1.msra.mxu0 %v1565
    %2130 = vmatprep.subr.mxu0 0.0
    %2131 = vmatpush1.msra.mxu0 %v1566
    %2132 = vmatprep.subr.mxu0 0.0
    %2133 = vmatpush1.msra.mxu0 %v1567
    %2134 = vmatprep.subr.mxu0 0.0
    %2135 = vmatpush1.msra.mxu0 %v1568
    %2136 = vmatprep.subr.mxu0 0.0
    %2137 = vmatpush1.msra.mxu0 %v1569
    %2138 = vmatprep.subr.mxu0 0.0
    %2139 = vmatpush1.msra.mxu0 0.0
    %2140 = vmatprep.subr.mxu0 0.0
    %2141 = vmatpush1.msra.mxu0 0.0
    %2142 = vmatprep.subr.mxu0 0.0
    %2143 = vmatpush1.msra.mxu0 0.0
    %2144 = vmatprep.subr.mxu0 0.0
    %2145 = vmatpush1.msra.mxu0 0.0
    %2146 = vmatprep.subr.mxu0 0.0
    %2147 = vmatpush1.msra.mxu0 0.0
    %2148 = vmatprep.subr.mxu0 0.0
    %2149 = vmatpush1.msra.mxu0 0.0
    %2150 = vmatprep.subr.mxu0 0.0
    %2151 = vmatpush1.msra.mxu0 0.0
    %2152 = vmatprep.subr.mxu0 0.0
    %2153 = vmatpush1.msra.mxu0 0.0
    %2154 = vmatprep.subr.mxu0 0.0
    %2155 = vmatpush1.msra.mxu0 0.0
    %2156 = vmatprep.subr.mxu0 0.0
    %2157 = vmatpush1.msra.mxu0 0.0
    %2158 = vmatprep.subr.mxu0 0.0
    %2159 = vmatpush1.msra.mxu0 0.0
    %2160 = vmatprep.subr.mxu0 0.0
    %2161 = vmatpush1.msra.mxu0 0.0
    %2162 = vmatprep.subr.mxu0 0.0
    %2163 = vmatpush1.msra.mxu0 0.0
    %2164 = vmatprep.subr.mxu0 0.0
    %2165 = vmatpush1.msra.mxu0 0.0
    %2166 = vmatprep.subr.mxu0 0.0
    %2167 = vmatpush1.msra.mxu0 0.0
    %2168 = vmatprep.subr.mxu0 0.0
    %2169 = vmatpush1.msra.mxu0 0.0
    %2170 = vmatprep.subr.mxu0 0.0
    %2171 = vmatpush1.msra.mxu0 0.0
    %2172 = vmatprep.subr.mxu0 0.0
    %2173 = vmatpush1.msra.mxu0 0.0
    %2174 = vmatprep.subr.mxu0 0.0
    %2175 = vmatpush1.msra.mxu0 0.0
    %2176 = vmatprep.subr.mxu0 0.0
    %2177 = vmatpush1.msra.mxu0 0.0
    %2178 = vmatprep.subr.mxu0 0.0
    %2179 = vmatpush1.msra.mxu0 0.0
    %2180 = vmatprep.subr.mxu0 0.0
    %2181 = vmatpush1.msra.mxu0 0.0
    %2182 = vmatprep.subr.mxu0 0.0
    %2183 = vmatpush1.msra.mxu0 0.0
    %2184 = vmatprep.subr.mxu0 0.0
    %2185 = vmatpush1.msra.mxu0 0.0
    %2186 = vmatprep.mubr.f32.mxu0 0.0
    %2187 = vmatmul.mubr.f32.gmra.mrb[0].mxu0 %v2120
    %v2188 = vpop.f32.mrb[0].mxu0
    %v2189 = vadd.f32 %v2117, %v2188
    %v2190 = vpop.f32.mrb[0].mxu0
    %2191 = vdwg.mxu0
    %v2192 = vtanh.pop %v2189
    %2193 = vst.msk [vmem:[#allocation4 + $0x6] sm:$0x1] %vm1723, %v2192
    %2194 = vst.msk [vmem:[#allocation4 + $0x1] sm:$0x1] %vm1725, %v2192
    %v2195 = vrot.slane %v1649, 6
    %v2198 = vsel %vm61, %v2192, 0
    %2200 = vmatprep.subr.mxu0 0.0
    %2201 = vmatpush1.msra.mxu0 %v1562
    %2202 = vmatprep.subr.mxu0 0.0
    %2203 = vmatpush1.msra.mxu0 %v1563
    %2204 = vmatprep.subr.mxu0 0.0
    %2205 = vmatpush1.msra.mxu0 %v1564
    %2206 = vmatprep.subr.mxu0 0.0
    %2207 = vmatpush1.msra.mxu0 %v1565
    %2208 = vmatprep.subr.mxu0 0.0
    %2209 = vmatpush1.msra.mxu0 %v1566
    %2210 = vmatprep.subr.mxu0 0.0
    %2211 = vmatpush1.msra.mxu0 %v1567
    %2212 = vmatprep.subr.mxu0 0.0
    %2213 = vmatpush1.msra.mxu0 %v1568
    %2214 = vmatprep.subr.mxu0 0.0
    %2215 = vmatpush1.msra.mxu0 %v1569
    %2216 = vmatprep.subr.mxu0 0.0
    %2217 = vmatpush1.msra.mxu0 0.0
    %2218 = vmatprep.subr.mxu0 0.0
    %2219 = vmatpush1.msra.mxu0 0.0
    %2220 = vmatprep.subr.mxu0 0.0
    %2221 = vmatpush1.msra.mxu0 0.0
    %2222 = vmatprep.subr.mxu0 0.0
    %2223 = vmatpush1.msra.mxu0 0.0
    %2224 = vmatprep.subr.mxu0 0.0
    %2225 = vmatpush1.msra.mxu0 0.0
    %2226 = vmatprep.subr.mxu0 0.0
    %2227 = vmatpush1.msra.mxu0 0.0
    %2228 = vmatprep.subr.mxu0 0.0
    %2229 = vmatpush1.msra.mxu0 0.0
    %2230 = vmatprep.subr.mxu0 0.0
    %2231 = vmatpush1.msra.mxu0 0.0
    %2232 = vmatprep.subr.mxu0 0.0
    %2233 = vmatpush1.msra.mxu0 0.0
    %2234 = vmatprep.subr.mxu0 0.0
    %2235 = vmatpush1.msra.mxu0 0.0
    %2236 = vmatprep.subr.mxu0 0.0
    %2237 = vmatpush1.msra.mxu0 0.0
    %2238 = vmatprep.subr.mxu0 0.0
    %2239 = vmatpush1.msra.mxu0 0.0
    %2240 = vmatprep.subr.mxu0 0.0
    %2241 = vmatpush1.msra.mxu0 0.0
    %2242 = vmatprep.subr.mxu0 0.0
    %2243 = vmatpush1.msra.mxu0 0.0
    %2244 = vmatprep.subr.mxu0 0.0
    %2245 = vmatpush1.msra.mxu0 0.0
    %2246 = vmatprep.subr.mxu0 0.0
    %2247 = vmatpush1.msra.mxu0 0.0
    %2248 = vmatprep.subr.mxu0 0.0
    %2249 = vmatpush1.msra.mxu0 0.0
    %2250 = vmatprep.subr.mxu0 0.0
    %2251 = vmatpush1.msra.mxu0 0.0
    %2252 = vmatprep.subr.mxu0 0.0
    %2253 = vmatpush1.msra.mxu0 0.0
    %2254 = vmatprep.subr.mxu0 0.0
    %2255 = vmatpush1.msra.mxu0 0.0
    %2256 = vmatprep.subr.mxu0 0.0
    %2257 = vmatpush1.msra.mxu0 0.0
    %2258 = vmatprep.subr.mxu0 0.0
    %2259 = vmatpush1.msra.mxu0 0.0
    %2260 = vmatprep.subr.mxu0 0.0
    %2261 = vmatpush1.msra.mxu0 0.0
    %2262 = vmatprep.subr.mxu0 0.0
    %2263 = vmatpush1.msra.mxu0 0.0
    %2264 = vmatprep.mubr.f32.mxu0 0.0
    %2265 = vmatmul.mubr.f32.gmra.mrb[0].mxu0 %v2198
    %v2266 = vpop.f32.mrb[0].mxu0
    %v2267 = vadd.f32 %v2195, %v2266
    %v2268 = vpop.f32.mrb[0].mxu0
    %2269 = vdwg.mxu0
    %v2270 = vtanh.pop %v2267
    %2271 = vst.msk [vmem:[#allocation4 + $0x7] sm:$0x1] %vm1723, %v2270
    %2272 = vst.msk [vmem:[#allocation4] sm:$0x1] %vm1725, %v2270
    %v2273 = vld [vmem:[#allocation4] sm:$0xff]
    %2275 = vrot.lane.b32.xlu0 %v2273, 96
    %v2276 = vpop.permute.xlu0 %2275
    %v2278 = vadd.f32 %v2273, %v2276
    %v2279 = vmul.f32 %v2278, 0.5
    %vm2280 = vcmask 261120
    %2281 = vst.msk [vmem:[#allocation5] sm:$0xff] %vm2280, %v2279
    // Predicated region
    $region42: #{simple_rnn_base_forward.1} parent=1 // pred_check
      _
    $region43: #{simple_rnn_base_forward.1} parent=1 // pred_check_branch
      %2283 = sbr.rel (0) target = $region45
    $region44: #{simple_rnn_base_forward.1} parent=1 // pred_region
      %s2285 = ssub.s32 128, 128
      %2286 = vsyncadd [#allocation6], %s2285
      %s2288 = sshll.u32 [#allocation5], 4
      %s2289 = int_to_ptr.vmem [resolvable:$true] %s2288
      %2291 = dma.vmem_to_hbm [thread:$0]  %s2289, 128, %s10, [#allocation6]
    $region45: #{simple_rnn_base_forward.1} parent=1 // pred_fallthru
      _
    // Predicated region
    $region46: #{simple_rnn_base_forward.1} parent=1 // pred_check
      _
    $region47: #{simple_rnn_base_forward.1} parent=1 // pred_check_branch
      %2293 = sbr.rel (0) target = $region49
    $region48: #{simple_rnn_base_forward.1} parent=1 // pred_region
      %2294 = dma.done [#allocation6], 128
    $region49: #{simple_rnn_base_forward.1} parent=1 // pred_fallthru
      _
    %2295 = vsyncpa [#allocation6], 1

</llo_original>
